<compile_context>
chip_gen: v6e
topology: v6e:2x2x1
jax: 0.10.0
libtpu: 0.0.40
codegen_flags: <defaults>
</compile_context>

<pallas_src>
import numpy as np
import jax
import jax.numpy as jnp
from jax.experimental import pallas as pl
from jax.experimental.pallas import tpu as pltpu


def _round_up(x, m):
    return ((x + m - 1) // m) * m


# --------------------------------------------------------------------------
# Pallas kernel: all heads packed on lanes, single block (grid=(1,))
# --------------------------------------------------------------------------
def kgat_kernel(node_emb_ref, rel_emb_ref,            # bf16 (Np,D), (Bp,D)
                m_ref, s_src_ref, s_dst_ref,          # bf16 (Np,Bp), (Bp,Np), (Bp,Np)
                rs_src_ref, rs_dst_ref, rrel_ref,     # bf16 (Rp,Np), (Rp,Np), (Rp,D)
                emask_ref,                            # f32  (Bp,1)
                w_src_ref, w_dst_ref, w_relc_ref,     # bf16 (D,Op)  folded, head-packed
                c_bias_ref,                           # f32  (1,Op)
                aw_ref, blk_ref, ab_ref,              # f32 (1,Op), bf16 (Op,Op), f32 (1,Op)
                w_rel2_ref, b_rel2_ref,               # bf16 (D,Op), f32 (1,Op)
                h_ent_ref, h_rel_ref):                # f32 (Np,Op), f32 (Rp,3*Op)
    f32, bf16 = jnp.float32, jnp.bfloat16
    Op = h_ent_ref.shape[-1]

    # ---- c = fc(cat([src,dst,rel])) with both linear layers folded on the host:
    #      c = S_src@(E@(W_ent@Wfc_src)) + S_dst@(E@(W_ent@Wfc_dst)) + R@(W_rel@Wfc_rel) + bias
    node_src = jnp.dot(node_emb_ref[...], w_src_ref[...], preferred_element_type=f32)   # (Np,Op)
    node_dst = jnp.dot(node_emb_ref[...], w_dst_ref[...], preferred_element_type=f32)   # (Np,Op)
    c = (jnp.dot(s_src_ref[...], node_src.astype(bf16), preferred_element_type=f32)
         + jnp.dot(s_dst_ref[...], node_dst.astype(bf16), preferred_element_type=f32)
         + jnp.dot(rel_emb_ref[...], w_relc_ref[...], preferred_element_type=f32)
         + c_bias_ref[...])                                                              # (Bp,Op)
    # TODO(synk): reference applies F.dropout(p=0.5, training=True) on the projected
    # features; omitted for determinism.

    # ---- per-head attention logit, replicated across each head's O lanes via a
    #      block-of-ones matmul (keeps the whole softmax chain lane-dense, no slicing)
    cw = (c * aw_ref[...]).astype(bf16)
    logit = jnp.dot(cw, blk_ref[...], preferred_element_type=f32) + ab_ref[...]          # (Bp,Op)
    logit = jnp.where(logit >= 0.0, logit, 0.01 * logit)                                  # leaky_relu
    emask = emask_ref[...]
    logit = jnp.where(emask > 0.0, logit, -1e30)          # mask padded edges (f32 path only)
    logit_max = jnp.max(logit, axis=0, keepdims=True)     # shift is alpha-invariant, exp finite
    b = jnp.exp(logit - logit_max) * emask                # (Bp,Op) f32

    # ---- neighborhood-normalised attention + aggregation (all heads in one pass)
    node_bsum = jnp.dot(m_ref[...], b.astype(bf16), preferred_element_type=f32)          # (Np,Op)
    b_sum = jnp.dot(s_src_ref[...], node_bsum.astype(bf16), preferred_element_type=f32)  # (Bp,Op)
    alpha = b * pl.reciprocal(jnp.where(b_sum > 0.0, b_sum, 1.0), approx=True)
    h_ent = jnp.dot(m_ref[...], (alpha * c).astype(bf16), preferred_element_type=f32)    # (Np,Op)
    h_ent_ref[...] = h_ent

    # ---- relation output [R_src | R_dst | fc_rel2(rel)] as one lane-dense (Rp,3*Op) store
    h_ent_b = h_ent.astype(bf16)
    h_rel_ref[:, 0:Op] = jnp.dot(rs_src_ref[...], h_ent_b, preferred_element_type=f32)
    h_rel_ref[:, Op:2 * Op] = jnp.dot(rs_dst_ref[...], h_ent_b, preferred_element_type=f32)
    h_rel_ref[:, 2 * Op:3 * Op] = (
        jnp.dot(rrel_ref[...], w_rel2_ref[...], preferred_element_type=f32) + b_rel2_ref[...])


def _pallas_run(inputs, Np, Rp, Opad):
    def spec(a):
        nd = a.ndim
        return pl.BlockSpec(tuple(a.shape), lambda i, nd=nd: (0,) * nd)

    in_specs = [spec(a) for a in inputs]
    out_shape = (jax.ShapeDtypeStruct((Np, Opad), jnp.float32),
                 jax.ShapeDtypeStruct((Rp, 3 * Opad), jnp.float32))
    out_specs = (pl.BlockSpec((Np, Opad), lambda i: (0, 0)),
                 pl.BlockSpec((Rp, 3 * Opad), lambda i: (0, 0)))

    in_bytes = sum(int(np.prod(a.shape)) * a.dtype.itemsize for a in inputs)
    out_bytes = (Np * Opad + Rp * 3 * Opad) * 4
    # Budget for worst-case double buffering + headroom; clamp so the tiny demo stays
    # at a modest limit and big graphs don't silently exceed v7x's 64 MiB/TC.
    vmem = int(min(max(2 * (in_bytes + out_bytes) + (4 << 20), 32 << 20), 96 << 20))

    return pl.pallas_call(
        kgat_kernel,
        grid=(1,),
        in_specs=in_specs,
        out_specs=out_specs,
        out_shape=out_shape,
        compiler_params=pltpu.CompilerParams(
            dimension_semantics=("arbitrary",),
            vmem_limit_bytes=vmem,
        ),
    )(*inputs)


# --------------------------------------------------------------------------
# Parameter construction (deterministic, mirrors KGATLayer.__init__ shapes)
# --------------------------------------------------------------------------
def make_head_params(key, input_dim, hidden_dim, output_dim):
    ks = jax.random.split(key, 12)
    s = 0.1
    return {
        "w_ent":  s * jax.random.normal(ks[0], (input_dim, hidden_dim), jnp.float32),
        "b_ent":  s * jax.random.normal(ks[1], (1, hidden_dim), jnp.float32),
        "w_rel":  s * jax.random.normal(ks[2], (input_dim, hidden_dim), jnp.float32),
        "b_rel":  s * jax.random.normal(ks[3], (1, hidden_dim), jnp.float32),
        "w_fc":   s * jax.random.normal(ks[4], (3 * hidden_dim, output_dim), jnp.float32),
        "b_fc":   s * jax.random.normal(ks[5], (1, output_dim), jnp.float32),
        "a_w":    s * jax.random.normal(ks[6], (output_dim, 1), jnp.float32),
        "a_b":    s * jax.random.normal(ks[7], (1, 1), jnp.float32),
        "w_rel2": s * jax.random.normal(ks[8], (hidden_dim, output_dim), jnp.float32),
        "b_rel2": s * jax.random.normal(ks[9], (1, output_dim), jnp.float32),
        # fc_rel3 exists in __init__ but is never used in forward; omitted.
    }


# --------------------------------------------------------------------------
# KGAT forward (host glue + fused head-packed Pallas kernel)
# --------------------------------------------------------------------------
def kgat_forward(triplets, ent_embed, rel_embed, head_params, hidden_dim, output_dim):
    tri = np.asarray(triplets)
    src_ids, dst_ids, rel_ids = tri[:, 0], tri[:, 1], tri[:, 2]
    B = int(tri.shape[0])
    H, O = int(hidden_dim), int(output_dim)
    num_heads = len(head_params)

    # node / relation re-mapping (reference: create_mappings / set())
    nodes = sorted(set(src_ids.tolist()) | set(dst_ids.tolist()))
    nmap = {n: i for i, n in enumerate(nodes)}
    rels_u = sorted(set(rel_ids.tolist()))
    rmap = {r: i for i, r in enumerate(rels_u)}
    N, R = len(nodes), len(rels_u)
    D = int(np.asarray(ent_embed).shape[1])

    # lane-dense padding
    Bp, Np, Rp = _round_up(B, 128), _round_up(N, 128), _round_up(R, 8)
    Opad = _round_up(num_heads * O, 128)

    # dense incidence / gather / relation-mean matrices
    # TODO(synk): get_batch_neighbors & r2e are undefined in the reference; interpreted as
    #   neighbors(u) = edges incident to u, r2e[r] = edges with relation r.  The dense
    #   O(N*B) formulation should become a scalar-prefetched gather/segment-sum for large graphs.
    M0 = np.zeros((N, B), np.float64)      # node x edge incidence
    Ssrc0 = np.zeros((B, N), np.float64)   # edge -> src-node one-hot
    Sdst0 = np.zeros((B, N), np.float64)   # edge -> dst-node one-hot
    Rn0 = np.zeros((R, B), np.float64)     # relation x edge (mean weights)
    rel_counts = {}
    for e in range(B):
        rel_counts[rel_ids[e]] = rel_counts.get(rel_ids[e], 0) + 1
    for e in range(B):
        u, v = nmap[src_ids[e]], nmap[dst_ids[e]]
        M0[u, e] = 1.0
        M0[v, e] = 1.0
        Ssrc0[e, u] = 1.0
        Sdst0[e, v] = 1.0
        Rn0[rmap[rel_ids[e]], e] = 1.0 / rel_counts[rel_ids[e]]

    node_emb0 = np.asarray(ent_embed, np.float64)[np.asarray(nodes)]     # (N, D) unique nodes
    rel_emb0 = np.asarray(rel_embed, np.float64)[rel_ids]                # (B, D) per edge
    rrel_emb0 = Rn0 @ rel_emb0                                           # (R, D)  host fold
    rs_src0 = Rn0 @ Ssrc0                                                # (R, N)  host fold
    rs_dst0 = Rn0 @ Sdst0                                                # (R, N)  host fold

    # ---- fold & head-pack the weights on the host (float64 folds) ----
    W_src = np.zeros((D, Opad), np.float64)
    W_dst = np.zeros((D, Opad), np.float64)
    W_relc = np.zeros((D, Opad), np.float64)
    W_rel2 = np.zeros((D, Opad), np.float64)
    c_bias = np.zeros((1, Opad), np.float64)
    b_rel2 = np.zeros((1, Opad), np.float64)
    aw = np.zeros((1, Opad), np.float64)
    ab = np.zeros((1, Opad), np.float64)
    blk = np.zeros((Opad, Opad), np.float64)     # per-head block of ones (logit replication)
    for h, p in enumerate(head_params):
        g = lambda k: np.asarray(p[k], np.float64)
        wfc = g("w_fc")
        sl = slice(h * O, (h + 1) * O)
        W_src[:, sl] = g("w_ent") @ wfc[0:H]
        W_dst[:, sl] = g("w_ent") @ wfc[H:2 * H]
        W_relc[:, sl] = g("w_rel") @ wfc[2 * H:3 * H]
        c_bias[:, sl] = (g("b_ent") @ wfc[0:H] + g("b_ent") @ wfc[H:2 * H]
                         + g("b_rel") @ wfc[2 * H:3 * H] + g("b_fc"))
        aw[:, sl] = g("a_w").T
        ab[:, sl] = g("a_b")
        blk[sl, sl] = 1.0
        W_rel2[:, sl] = g("w_rel") @ g("w_rel2")
        b_rel2[:, sl] = g("b_rel") @ g("w_rel2") + g("b_rel2")

    def pad2(a, rows, cols):
        out = np.zeros((rows, cols), np.float64)
        out[:a.shape[0], :a.shape[1]] = a
        return out

    emask = np.zeros((Bp, 1), np.float32)
    emask[:B, 0] = 1.0

    bf16, f32 = jnp.bfloat16, jnp.float32
    inputs = [
        jnp.asarray(pad2(node_emb0, Np, D), bf16),
        jnp.asarray(pad2(rel_emb0, Bp, D), bf16),
        jnp.asarray(pad2(M0, Np, Bp), bf16),        # 0/1 exact in bf16
        jnp.asarray(pad2(Ssrc0, Bp, Np), bf16),
        jnp.asarray(pad2(Sdst0, Bp, Np), bf16),
        jnp.asarray(pad2(rs_src0, Rp, Np), bf16),   # explicit bf16 (avoid f32 MXU emulation)
        jnp.asarray(pad2(rs_dst0, Rp, Np), bf16),
        jnp.asarray(pad2(rrel_emb0, Rp, D), bf16),
        jnp.asarray(emask, f32),
        jnp.asarray(W_src, bf16),
        jnp.asarray(W_dst, bf16),
        jnp.asarray(W_relc, bf16),
        jnp.asarray(c_bias, f32),
        jnp.asarray(aw, f32),
        jnp.asarray(blk, bf16),
        jnp.asarray(ab, f32),
        jnp.asarray(W_rel2, bf16),
        jnp.asarray(b_rel2, f32),
    ]

    h_ent_p, h_rel_p = _pallas_run(inputs, Np, Rp, Opad)

    # TODO(synk): reference does torch.mean on a Python list (invalid); interpreted as mean over heads.
    HO = num_heads * O
    h_ent = jnp.mean(h_ent_p[:N, :HO].reshape(N, num_heads, O), axis=1)                 # (N, O)
    hr_s = h_rel_p[:R, 0:HO].reshape(R, num_heads, O)
    hr_d = h_rel_p[:R, Opad:Opad + HO].reshape(R, num_heads, O)
    hr_r = h_rel_p[:R, 2 * Opad:2 * Opad + HO].reshape(R, num_heads, O)
    h_rel = jnp.mean(jnp.concatenate([hr_s, hr_d, hr_r], axis=-1), axis=1)              # (R, 3*O)
    return h_ent, h_rel


# --------------------------------------------------------------------------
# Pure-NumPy reference (f64) with identical semantics, for validation
# --------------------------------------------------------------------------
def kgat_reference(triplets, ent_embed, rel_embed, head_params, hidden_dim, output_dim):
    tri = np.asarray(triplets)
    src_ids, dst_ids, rel_ids = tri[:, 0], tri[:, 1], tri[:, 2]
    B = tri.shape[0]
    nodes = sorted(set(src_ids.tolist()) | set(dst_ids.tolist()))
    nmap = {n: i for i, n in enumerate(nodes)}
    rels_u = sorted(set(rel_ids.tolist()))
    rmap = {r: i for i, r in enumerate(rels_u)}
    N, R = len(nodes), len(rels_u)
    M0 = np.zeros((N, B)); Ssrc0 = np.zeros((B, N)); Sdst0 = np.zeros((B, N)); Rn0 = np.zeros((R, B))
    counts = {}
    for e in range(B):
        counts[rel_ids[e]] = counts.get(rel_ids[e], 0) + 1
    for e in range(B):
        u, v = nmap[src_ids[e]], nmap[dst_ids[e]]
        M0[u, e] = 1.0; M0[v, e] = 1.0; Ssrc0[e, u] = 1.0; Sdst0[e, v] = 1.0
        Rn0[rmap[rel_ids[e]], e] = 1.0 / counts[rel_ids[e]]
    node_emb = np.asarray(ent_embed, np.float64)[np.asarray(nodes)]
    rel_emb = np.asarray(rel_embed, np.float64)[rel_ids]

    h_ents, h_rels = [], []
    for p in head_params:
        g = lambda k: np.asarray(p[k], np.float64)
        ent_h = node_emb @ g("w_ent") + g("b_ent")
        rel_h = rel_emb @ g("w_rel") + g("b_rel")
        src_h, dst_h = Ssrc0 @ ent_h, Sdst0 @ ent_h
        c = np.concatenate([src_h, dst_h, rel_h], axis=1) @ g("w_fc") + g("b_fc")
        logit = c @ g("a_w") + g("a_b")
        logit = np.where(logit >= 0, logit, 0.01 * logit)
        b = np.exp(logit)
        alpha = b / (Ssrc0 @ (M0 @ b))
        h_ent = M0 @ (alpha * c)
        rel2 = rel_h @ g("w_rel2") + g("b_rel2")
        h_rel = np.concatenate([Rn0 @ (Ssrc0 @ h_ent), Rn0 @ (Sdst0 @ h_ent), Rn0 @ rel2], axis=1)
        h_ents.append(h_ent); h_rels.append(h_rel)
    return np.mean(np.stack(h_ents), axis=0), np.mean(np.stack(h_rels), axis=0)


# --------------------------------------------------------------------------
if __name__ == "__main__":
    input_dim, hidden_dim, output_dim = 16, 32, 32
    num_heads, num_nodes, num_rels = 2, 10, 4
    batch = 8  # number of triplets

    key = jax.random.PRNGKey(0)
    k_tri, k_ent, k_rel, k_par = jax.random.split(key, 4)

    src = jax.random.randint(jax.random.fold_in(k_tri, 0), (batch,), 0, num_nodes)
    dst = jax.random.randint(jax.random.fold_in(k_tri, 1), (batch,), 0, num_nodes)
    rel = jax.random.randint(jax.random.fold_in(k_tri, 2), (batch,), 0, num_rels)
    triplets = np.stack([np.asarray(src), np.asarray(dst), np.asarray(rel)], axis=1)

    ent_embed = jax.random.normal(k_ent, (num_nodes, input_dim), jnp.float32)
    rel_embed = jax.random.normal(k_rel, (num_rels, input_dim), jnp.float32)

    head_params = [make_head_params(jax.random.fold_in(k_par, h),
                                    input_dim, hidden_dim, output_dim)
                   for h in range(num_heads)]
    # NOTE: KGAT.__init__ also builds a second layer `a2`, but KGAT.forward never calls it.

    h_ent, h_rel = kgat_forward(triplets, ent_embed, rel_embed,
                                head_params, hidden_dim, output_dim)
    jax.block_until_ready((h_ent, h_rel))

    assert h_ent.shape[1] == output_dim
    assert h_rel.shape[1] == 3 * output_dim
    assert bool(jnp.all(jnp.isfinite(h_ent))) and bool(jnp.all(jnp.isfinite(h_rel)))

    # validate against the pure-NumPy f64 reference (loose tolerance: bf16 matmul inputs)
    h_ent_ref, h_rel_ref = kgat_reference(triplets, ent_embed, rel_embed,
                                          head_params, hidden_dim, output_dim)
    assert np.allclose(np.asarray(h_ent), h_ent_ref, rtol=1e-1, atol=1e-1)
    assert np.allclose(np.asarray(h_rel), h_rel_ref, rtol=1e-1, atol=1e-1)
    print("KERNEL_OK")
</pallas_src>

<mosaic_0001>
module attributes {stable_mosaic.version = 11 : i64} {
  func.func @kgat_kernel(%arg0: i32, %arg1: memref<128x16xbf16, #tpu.memory_space<vmem>>, %arg2: memref<128x16xbf16, #tpu.memory_space<vmem>>, %arg3: memref<128x128xbf16, #tpu.memory_space<vmem>>, %arg4: memref<128x128xbf16, #tpu.memory_space<vmem>>, %arg5: memref<128x128xbf16, #tpu.memory_space<vmem>>, %arg6: memref<8x128xbf16, #tpu.memory_space<vmem>>, %arg7: memref<8x128xbf16, #tpu.memory_space<vmem>>, %arg8: memref<8x16xbf16, #tpu.memory_space<vmem>>, %arg9: memref<128x1xf32, #tpu.memory_space<vmem>>, %arg10: memref<16x128xbf16, #tpu.memory_space<vmem>>, %arg11: memref<16x128xbf16, #tpu.memory_space<vmem>>, %arg12: memref<16x128xbf16, #tpu.memory_space<vmem>>, %arg13: memref<1x128xf32, #tpu.memory_space<vmem>>, %arg14: memref<1x128xf32, #tpu.memory_space<vmem>>, %arg15: memref<128x128xbf16, #tpu.memory_space<vmem>>, %arg16: memref<1x128xf32, #tpu.memory_space<vmem>>, %arg17: memref<16x128xbf16, #tpu.memory_space<vmem>>, %arg18: memref<1x128xf32, #tpu.memory_space<vmem>>, %arg19: memref<128x128xf32, #tpu.memory_space<vmem>>, %arg20: memref<8x384xf32, #tpu.memory_space<vmem>>) attributes {dimension_semantics = [#tpu.dimension_semantics<arbitrary>], iteration_bounds = array<i64: 1>, scalar_prefetch = 0 : i64, scratch_operands = 0 : i64, tpu.core_type = #tpu.core_type<tc>, window_params = [{pipeline_mode = #tpu.pipeline_mode<synchronous>, transform_indices = @transform_0, window_bounds = array<i64: 128, 16>}, {pipeline_mode = #tpu.pipeline_mode<synchronous>, transform_indices = @transform_1, window_bounds = array<i64: 128, 16>}, {pipeline_mode = #tpu.pipeline_mode<synchronous>, transform_indices = @transform_2, window_bounds = array<i64: 128, 128>}, {pipeline_mode = #tpu.pipeline_mode<synchronous>, transform_indices = @transform_3, window_bounds = array<i64: 128, 128>}, {pipeline_mode = #tpu.pipeline_mode<synchronous>, transform_indices = @transform_4, window_bounds = array<i64: 128, 128>}, {pipeline_mode = #tpu.pipeline_mode<synchronous>, transform_indices = @transform_5, window_bounds = array<i64: 8, 128>}, {pipeline_mode = #tpu.pipeline_mode<synchronous>, transform_indices = @transform_6, window_bounds = array<i64: 8, 128>}, {pipeline_mode = #tpu.pipeline_mode<synchronous>, transform_indices = @transform_7, window_bounds = array<i64: 8, 16>}, {pipeline_mode = #tpu.pipeline_mode<synchronous>, transform_indices = @transform_8, window_bounds = array<i64: 128, 1>}, {pipeline_mode = #tpu.pipeline_mode<synchronous>, transform_indices = @transform_9, window_bounds = array<i64: 16, 128>}, {pipeline_mode = #tpu.pipeline_mode<synchronous>, transform_indices = @transform_10, window_bounds = array<i64: 16, 128>}, {pipeline_mode = #tpu.pipeline_mode<synchronous>, transform_indices = @transform_11, window_bounds = array<i64: 16, 128>}, {pipeline_mode = #tpu.pipeline_mode<synchronous>, transform_indices = @transform_12, window_bounds = array<i64: 1, 128>}, {pipeline_mode = #tpu.pipeline_mode<synchronous>, transform_indices = @transform_13, window_bounds = array<i64: 1, 128>}, {pipeline_mode = #tpu.pipeline_mode<synchronous>, transform_indices = @transform_14, window_bounds = array<i64: 128, 128>}, {pipeline_mode = #tpu.pipeline_mode<synchronous>, transform_indices = @transform_15, window_bounds = array<i64: 1, 128>}, {pipeline_mode = #tpu.pipeline_mode<synchronous>, transform_indices = @transform_16, window_bounds = array<i64: 16, 128>}, {pipeline_mode = #tpu.pipeline_mode<synchronous>, transform_indices = @transform_17, window_bounds = array<i64: 1, 128>}, {pipeline_mode = #tpu.pipeline_mode<synchronous>, transform_indices = @transform_18, window_bounds = array<i64: 128, 128>}, {pipeline_mode = #tpu.pipeline_mode<synchronous>, transform_indices = @transform_19, window_bounds = array<i64: 8, 384>}]} {
    %c0 = arith.constant 0 : index
    %c0_0 = arith.constant 0 : index
    %0 = vector.load %arg1[%c0, %c0_0] : memref<128x16xbf16, #tpu.memory_space<vmem>>, vector<128x16xbf16>
    %c0_1 = arith.constant 0 : index
    %c0_2 = arith.constant 0 : index
    %1 = vector.load %arg10[%c0_1, %c0_2] : memref<16x128xbf16, #tpu.memory_space<vmem>>, vector<16x128xbf16>
    %cst = arith.constant dense<0.000000e+00> : vector<128x128xf32>
    %2 = tpu.matmul %0, %1, %cst {dimension_numbers = #tpu.dot_dimension_numbers<[1], [0], [0], [1], [0, 0, 1, 1], [], []>} : vector<128x16xbf16>, vector<16x128xbf16>, vector<128x128xf32> -> vector<128x128xf32>
    %c0_3 = arith.constant 0 : index
    %c0_4 = arith.constant 0 : index
    %3 = vector.load %arg1[%c0_3, %c0_4] : memref<128x16xbf16, #tpu.memory_space<vmem>>, vector<128x16xbf16>
    %c0_5 = arith.constant 0 : index
    %c0_6 = arith.constant 0 : index
    %4 = vector.load %arg11[%c0_5, %c0_6] : memref<16x128xbf16, #tpu.memory_space<vmem>>, vector<16x128xbf16>
    %cst_7 = arith.constant dense<0.000000e+00> : vector<128x128xf32>
    %5 = tpu.matmul %3, %4, %cst_7 {dimension_numbers = #tpu.dot_dimension_numbers<[1], [0], [0], [1], [0, 0, 1, 1], [], []>} : vector<128x16xbf16>, vector<16x128xbf16>, vector<128x128xf32> -> vector<128x128xf32>
    %c0_8 = arith.constant 0 : index
    %c0_9 = arith.constant 0 : index
    %6 = vector.load %arg4[%c0_8, %c0_9] : memref<128x128xbf16, #tpu.memory_space<vmem>>, vector<128x128xbf16>
    %7 = arith.truncf %2 : vector<128x128xf32> to vector<128x128xbf16>
    %cst_10 = arith.constant dense<0.000000e+00> : vector<128x128xf32>
    %8 = tpu.matmul %6, %7, %cst_10 {dimension_numbers = #tpu.dot_dimension_numbers<[1], [0], [0], [1], [0, 0, 1, 1], [], []>} : vector<128x128xbf16>, vector<128x128xbf16>, vector<128x128xf32> -> vector<128x128xf32>
    %c0_11 = arith.constant 0 : index
    %c0_12 = arith.constant 0 : index
    %9 = vector.load %arg5[%c0_11, %c0_12] : memref<128x128xbf16, #tpu.memory_space<vmem>>, vector<128x128xbf16>
    %10 = arith.truncf %5 : vector<128x128xf32> to vector<128x128xbf16>
    %cst_13 = arith.constant dense<0.000000e+00> : vector<128x128xf32>
    %11 = tpu.matmul %9, %10, %cst_13 {dimension_numbers = #tpu.dot_dimension_numbers<[1], [0], [0], [1], [0, 0, 1, 1], [], []>} : vector<128x128xbf16>, vector<128x128xbf16>, vector<128x128xf32> -> vector<128x128xf32>
    %12 = arith.addf %8, %11 : vector<128x128xf32>
    %c0_14 = arith.constant 0 : index
    %c0_15 = arith.constant 0 : index
    %13 = vector.load %arg2[%c0_14, %c0_15] : memref<128x16xbf16, #tpu.memory_space<vmem>>, vector<128x16xbf16>
    %c0_16 = arith.constant 0 : index
    %c0_17 = arith.constant 0 : index
    %14 = vector.load %arg12[%c0_16, %c0_17] : memref<16x128xbf16, #tpu.memory_space<vmem>>, vector<16x128xbf16>
    %cst_18 = arith.constant dense<0.000000e+00> : vector<128x128xf32>
    %15 = tpu.matmul %13, %14, %cst_18 {dimension_numbers = #tpu.dot_dimension_numbers<[1], [0], [0], [1], [0, 0, 1, 1], [], []>} : vector<128x16xbf16>, vector<16x128xbf16>, vector<128x128xf32> -> vector<128x128xf32>
    %16 = arith.addf %12, %15 : vector<128x128xf32>
    %c0_19 = arith.constant 0 : index
    %c0_20 = arith.constant 0 : index
    %17 = vector.load %arg13[%c0_19, %c0_20] : memref<1x128xf32, #tpu.memory_space<vmem>>, vector<1x128xf32>
    %18 = vector.broadcast %17 : vector<1x128xf32> to vector<128x128xf32>
    %19 = arith.addf %16, %18 : vector<128x128xf32>
    %c0_21 = arith.constant 0 : index
    %c0_22 = arith.constant 0 : index
    %20 = vector.load %arg14[%c0_21, %c0_22] : memref<1x128xf32, #tpu.memory_space<vmem>>, vector<1x128xf32>
    %21 = vector.broadcast %20 : vector<1x128xf32> to vector<128x128xf32>
    %22 = arith.mulf %19, %21 : vector<128x128xf32>
    %23 = arith.truncf %22 : vector<128x128xf32> to vector<128x128xbf16>
    %c0_23 = arith.constant 0 : index
    %c0_24 = arith.constant 0 : index
    %24 = vector.load %arg15[%c0_23, %c0_24] : memref<128x128xbf16, #tpu.memory_space<vmem>>, vector<128x128xbf16>
    %cst_25 = arith.constant dense<0.000000e+00> : vector<128x128xf32>
    %25 = tpu.matmul %23, %24, %cst_25 {dimension_numbers = #tpu.dot_dimension_numbers<[1], [0], [0], [1], [0, 0, 1, 1], [], []>} : vector<128x128xbf16>, vector<128x128xbf16>, vector<128x128xf32> -> vector<128x128xf32>
    %c0_26 = arith.constant 0 : index
    %c0_27 = arith.constant 0 : index
    %26 = vector.load %arg16[%c0_26, %c0_27] : memref<1x128xf32, #tpu.memory_space<vmem>>, vector<1x128xf32>
    %27 = vector.broadcast %26 : vector<1x128xf32> to vector<128x128xf32>
    %28 = arith.addf %25, %27 : vector<128x128xf32>
    %cst_28 = arith.constant 0.000000e+00 : f32
    %29 = vector.broadcast %cst_28 : f32 to vector<128x128xf32>
    %30 = arith.cmpf oge, %28, %29 : vector<128x128xf32>
    %cst_29 = arith.constant 0.00999999977 : f32
    %31 = vector.broadcast %cst_29 : f32 to vector<128x128xf32>
    %32 = arith.mulf %31, %28 : vector<128x128xf32>
    %33 = arith.select %30, %28, %32 : vector<128x128xi1>, vector<128x128xf32>
    %c0_30 = arith.constant 0 : index
    %c0_31 = arith.constant 0 : index
    %34 = vector.load %arg9[%c0_30, %c0_31] : memref<128x1xf32, #tpu.memory_space<vmem>>, vector<128x1xf32>
    %cst_32 = arith.constant 0.000000e+00 : f32
    %35 = vector.broadcast %cst_32 : f32 to vector<128x1xf32>
    %36 = arith.cmpf ogt, %34, %35 : vector<128x1xf32>
    %cst_33 = arith.constant -1.000000e+30 : f32
    %37 = vector.shape_cast %36 : vector<128x1xi1> to vector<128x1xi1>
    %38 = vector.broadcast %37 : vector<128x1xi1> to vector<128x128xi1>
    %39 = vector.broadcast %cst_33 : f32 to vector<128x128xf32>
    %40 = arith.select %38, %33, %39 : vector<128x128xi1>, vector<128x128xf32>
    %cst_34 = arith.constant dense<0xFF800000> : vector<128xf32>
    %41 = vector.multi_reduction <maximumf>, %40, %cst_34 [0] : vector<128x128xf32> to vector<128xf32>
    %42 = vector.shape_cast %41 : vector<128xf32> to vector<1x128xf32>
    %43 = vector.broadcast %42 : vector<1x128xf32> to vector<128x128xf32>
    %44 = arith.subf %40, %43 : vector<128x128xf32>
    %45 = math.exp %44 : vector<128x128xf32>
    %46 = vector.broadcast %34 : vector<128x1xf32> to vector<128x128xf32>
    %47 = arith.mulf %45, %46 : vector<128x128xf32>
    %c0_35 = arith.constant 0 : index
    %c0_36 = arith.constant 0 : index
    %48 = vector.load %arg3[%c0_35, %c0_36] : memref<128x128xbf16, #tpu.memory_space<vmem>>, vector<128x128xbf16>
    %49 = arith.truncf %47 : vector<128x128xf32> to vector<128x128xbf16>
    %cst_37 = arith.constant dense<0.000000e+00> : vector<128x128xf32>
    %50 = tpu.matmul %48, %49, %cst_37 {dimension_numbers = #tpu.dot_dimension_numbers<[1], [0], [0], [1], [0, 0, 1, 1], [], []>} : vector<128x128xbf16>, vector<128x128xbf16>, vector<128x128xf32> -> vector<128x128xf32>
    %c0_38 = arith.constant 0 : index
    %c0_39 = arith.constant 0 : index
    %51 = vector.load %arg4[%c0_38, %c0_39] : memref<128x128xbf16, #tpu.memory_space<vmem>>, vector<128x128xbf16>
    %52 = arith.truncf %50 : vector<128x128xf32> to vector<128x128xbf16>
    %cst_40 = arith.constant dense<0.000000e+00> : vector<128x128xf32>
    %53 = tpu.matmul %51, %52, %cst_40 {dimension_numbers = #tpu.dot_dimension_numbers<[1], [0], [0], [1], [0, 0, 1, 1], [], []>} : vector<128x128xbf16>, vector<128x128xbf16>, vector<128x128xf32> -> vector<128x128xf32>
    %cst_41 = arith.constant 0.000000e+00 : f32
    %54 = vector.broadcast %cst_41 : f32 to vector<128x128xf32>
    %55 = arith.cmpf ogt, %53, %54 : vector<128x128xf32>
    %cst_42 = arith.constant 1.000000e+00 : f32
    %56 = vector.broadcast %cst_42 : f32 to vector<128x128xf32>
    %57 = arith.select %55, %53, %56 : vector<128x128xi1>, vector<128x128xf32>
    %58 = tpu.reciprocal %57 {approx = true} : vector<128x128xf32> -> vector<128x128xf32>
    %59 = arith.mulf %47, %58 : vector<128x128xf32>
    %c0_43 = arith.constant 0 : index
    %c0_44 = arith.constant 0 : index
    %60 = vector.load %arg3[%c0_43, %c0_44] : memref<128x128xbf16, #tpu.memory_space<vmem>>, vector<128x128xbf16>
    %61 = arith.mulf %59, %19 : vector<128x128xf32>
    %62 = arith.truncf %61 : vector<128x128xf32> to vector<128x128xbf16>
    %cst_45 = arith.constant dense<0.000000e+00> : vector<128x128xf32>
    %63 = tpu.matmul %60, %62, %cst_45 {dimension_numbers = #tpu.dot_dimension_numbers<[1], [0], [0], [1], [0, 0, 1, 1], [], []>} : vector<128x128xbf16>, vector<128x128xbf16>, vector<128x128xf32> -> vector<128x128xf32>
    %c0_46 = arith.constant 0 : index
    %c0_47 = arith.constant 0 : index
    %64 = vector.load %arg19[%c0_46, %c0_47] : memref<128x128xf32, #tpu.memory_space<vmem>>, vector<128x128xf32>
    tpu.vector_store %arg19[%c0_46, %c0_47], %63 {strides = array<i32>} : memref<128x128xf32, #tpu.memory_space<vmem>>, vector<128x128xf32>,
    %65 = arith.truncf %63 : vector<128x128xf32> to vector<128x128xbf16>
    %c0_48 = arith.constant 0 : index
    %c0_49 = arith.constant 0 : index
    %66 = vector.load %arg6[%c0_48, %c0_49] : memref<8x128xbf16, #tpu.memory_space<vmem>>, vector<8x128xbf16>
    %cst_50 = arith.constant dense<0.000000e+00> : vector<8x128xf32>
    %67 = tpu.matmul %66, %65, %cst_50 {dimension_numbers = #tpu.dot_dimension_numbers<[1], [0], [0], [1], [0, 0, 1, 1], [], []>} : vector<8x128xbf16>, vector<128x128xbf16>, vector<8x128xf32> -> vector<8x128xf32>
    %c0_51 = arith.constant 0 : index
    %c0_52 = arith.constant 0 : index
    %68 = vector.load %arg20[%c0_51, %c0_52] : memref<8x384xf32, #tpu.memory_space<vmem>>, vector<8x128xf32>
    tpu.vector_store %arg20[%c0_51, %c0_52], %67 {strides = array<i32>} : memref<8x384xf32, #tpu.memory_space<vmem>>, vector<8x128xf32>,
    %c0_53 = arith.constant 0 : index
    %c0_54 = arith.constant 0 : index
    %69 = vector.load %arg7[%c0_53, %c0_54] : memref<8x128xbf16, #tpu.memory_space<vmem>>, vector<8x128xbf16>
    %cst_55 = arith.constant dense<0.000000e+00> : vector<8x128xf32>
    %70 = tpu.matmul %69, %65, %cst_55 {dimension_numbers = #tpu.dot_dimension_numbers<[1], [0], [0], [1], [0, 0, 1, 1], [], []>} : vector<8x128xbf16>, vector<128x128xbf16>, vector<8x128xf32> -> vector<8x128xf32>
    %c0_56 = arith.constant 0 : index
    %c128 = arith.constant 128 : index
    %71 = vector.load %arg20[%c0_56, %c128] : memref<8x384xf32, #tpu.memory_space<vmem>>, vector<8x128xf32>
    tpu.vector_store %arg20[%c0_56, %c128], %70 {strides = array<i32>} : memref<8x384xf32, #tpu.memory_space<vmem>>, vector<8x128xf32>,
    %c0_57 = arith.constant 0 : index
    %c0_58 = arith.constant 0 : index
    %72 = vector.load %arg8[%c0_57, %c0_58] : memref<8x16xbf16, #tpu.memory_space<vmem>>, vector<8x16xbf16>
    %c0_59 = arith.constant 0 : index
    %c0_60 = arith.constant 0 : index
    %73 = vector.load %arg17[%c0_59, %c0_60] : memref<16x128xbf16, #tpu.memory_space<vmem>>, vector<16x128xbf16>
    %cst_61 = arith.constant dense<0.000000e+00> : vector<8x128xf32>
    %74 = tpu.matmul %72, %73, %cst_61 {dimension_numbers = #tpu.dot_dimension_numbers<[1], [0], [0], [1], [0, 0, 1, 1], [], []>} : vector<8x16xbf16>, vector<16x128xbf16>, vector<8x128xf32> -> vector<8x128xf32>
    %c0_62 = arith.constant 0 : index
    %c0_63 = arith.constant 0 : index
    %75 = vector.load %arg18[%c0_62, %c0_63] : memref<1x128xf32, #tpu.memory_space<vmem>>, vector<1x128xf32>
    %76 = vector.broadcast %75 : vector<1x128xf32> to vector<8x128xf32>
    %77 = arith.addf %74, %76 : vector<8x128xf32>
    %c0_64 = arith.constant 0 : index
    %c256 = arith.constant 256 : index
    %78 = vector.load %arg20[%c0_64, %c256] : memref<8x384xf32, #tpu.memory_space<vmem>>, vector<8x128xf32>
    tpu.vector_store %arg20[%c0_64, %c256], %77 {strides = array<i32>} : memref<8x384xf32, #tpu.memory_space<vmem>>, vector<8x128xf32>,
    return
  }
  func.func @transform_0(%arg0: i32) -> (i32, i32) {
    %c0_i32 = arith.constant 0 : i32
    %c0_i32_0 = arith.constant 0 : i32
    %c0_i32_1 = arith.constant 0 : i32
    return %c0_i32, %c0_i32_0 : i32, i32
  }
  func.func @transform_1(%arg0: i32) -> (i32, i32) {
    %c0_i32 = arith.constant 0 : i32
    %c0_i32_0 = arith.constant 0 : i32
    %c0_i32_1 = arith.constant 0 : i32
    return %c0_i32, %c0_i32_0 : i32, i32
  }
  func.func @transform_2(%arg0: i32) -> (i32, i32) {
    %c0_i32 = arith.constant 0 : i32
    %c0_i32_0 = arith.constant 0 : i32
    %c0_i32_1 = arith.constant 0 : i32
    return %c0_i32, %c0_i32_0 : i32, i32
  }
  func.func @transform_3(%arg0: i32) -> (i32, i32) {
    %c0_i32 = arith.constant 0 : i32
    %c0_i32_0 = arith.constant 0 : i32
    %c0_i32_1 = arith.constant 0 : i32
    return %c0_i32, %c0_i32_0 : i32, i32
  }
  func.func @transform_4(%arg0: i32) -> (i32, i32) {
    %c0_i32 = arith.constant 0 : i32
    %c0_i32_0 = arith.constant 0 : i32
    %c0_i32_1 = arith.constant 0 : i32
    return %c0_i32, %c0_i32_0 : i32, i32
  }
  func.func @transform_5(%arg0: i32) -> (i32, i32) {
    %c0_i32 = arith.constant 0 : i32
    %c0_i32_0 = arith.constant 0 : i32
    %c0_i32_1 = arith.constant 0 : i32
    return %c0_i32, %c0_i32_0 : i32, i32
  }
  func.func @transform_6(%arg0: i32) -> (i32, i32) {
    %c0_i32 = arith.constant 0 : i32
    %c0_i32_0 = arith.constant 0 : i32
    %c0_i32_1 = arith.constant 0 : i32
    return %c0_i32, %c0_i32_0 : i32, i32
  }
  func.func @transform_7(%arg0: i32) -> (i32, i32) {
    %c0_i32 = arith.constant 0 : i32
    %c0_i32_0 = arith.constant 0 : i32
    %c0_i32_1 = arith.constant 0 : i32
    return %c0_i32, %c0_i32_0 : i32, i32
  }
  func.func @transform_8(%arg0: i32) -> (i32, i32) {
    %c0_i32 = arith.constant 0 : i32
    %c0_i32_0 = arith.constant 0 : i32
    %c0_i32_1 = arith.constant 0 : i32
    return %c0_i32, %c0_i32_0 : i32, i32
  }
  func.func @transform_9(%arg0: i32) -> (i32, i32) {
    %c0_i32 = arith.constant 0 : i32
    %c0_i32_0 = arith.constant 0 : i32
    %c0_i32_1 = arith.constant 0 : i32
    return %c0_i32, %c0_i32_0 : i32, i32
  }
  func.func @transform_10(%arg0: i32) -> (i32, i32) {
    %c0_i32 = arith.constant 0 : i32
    %c0_i32_0 = arith.constant 0 : i32
    %c0_i32_1 = arith.constant 0 : i32
    return %c0_i32, %c0_i32_0 : i32, i32
  }
  func.func @transform_11(%arg0: i32) -> (i32, i32) {
    %c0_i32 = arith.constant 0 : i32
    %c0_i32_0 = arith.constant 0 : i32
    %c0_i32_1 = arith.constant 0 : i32
    return %c0_i32, %c0_i32_0 : i32, i32
  }
  func.func @transform_12(%arg0: i32) -> (i32, i32) {
    %c0_i32 = arith.constant 0 : i32
    %c0_i32_0 = arith.constant 0 : i32
    %c0_i32_1 = arith.constant 0 : i32
    return %c0_i32, %c0_i32_0 : i32, i32
  }
  func.func @transform_13(%arg0: i32) -> (i32, i32) {
    %c0_i32 = arith.constant 0 : i32
    %c0_i32_0 = arith.constant 0 : i32
    %c0_i32_1 = arith.constant 0 : i32
    return %c0_i32, %c0_i32_0 : i32, i32
  }
  func.func @transform_14(%arg0: i32) -> (i32, i32) {
    %c0_i32 = arith.constant 0 : i32
    %c0_i32_0 = arith.constant 0 : i32
    %c0_i32_1 = arith.constant 0 : i32
    return %c0_i32, %c0_i32_0 : i32, i32
  }
  func.func @transform_15(%arg0: i32) -> (i32, i32) {
    %c0_i32 = arith.constant 0 : i32
    %c0_i32_0 = arith.constant 0 : i32
    %c0_i32_1 = arith.constant 0 : i32
    return %c0_i32, %c0_i32_0 : i32, i32
  }
  func.func @transform_16(%arg0: i32) -> (i32, i32) {
    %c0_i32 = arith.constant 0 : i32
    %c0_i32_0 = arith.constant 0 : i32
    %c0_i32_1 = arith.constant 0 : i32
    return %c0_i32, %c0_i32_0 : i32, i32
  }
  func.func @transform_17(%arg0: i32) -> (i32, i32) {
    %c0_i32 = arith.constant 0 : i32
    %c0_i32_0 = arith.constant 0 : i32
    %c0_i32_1 = arith.constant 0 : i32
    return %c0_i32, %c0_i32_0 : i32, i32
  }
  func.func @transform_18(%arg0: i32) -> (i32, i32) {
    %c0_i32 = arith.constant 0 : i32
    %c0_i32_0 = arith.constant 0 : i32
    %c0_i32_1 = arith.constant 0 : i32
    return %c0_i32, %c0_i32_0 : i32, i32
  }
  func.func @transform_19(%arg0: i32) -> (i32, i32) {
    %c0_i32 = arith.constant 0 : i32
    %c0_i32_0 = arith.constant 0 : i32
    %c0_i32_1 = arith.constant 0 : i32
    return %c0_i32, %c0_i32_0 : i32, i32
  }
}

</mosaic_0001>

<llo_original>
// kernel: tpu_custom_call.1
$region0: #{tpu_custom_call.1}
  #allocation0 [shape = 'u32[]', space=smem, size = 0x4, offset = 0x4, fixed_abs, tag = 'smem constant byte address 0x4 - core index']
  #allocation1 [shape = 'u32[144,128]{1,0:T(1,128)}', space=vmem, size = 0x12000, scoped, tag = 'internal scratch']
  %s0 = inlined_call_operand.vmem [shape: bf16[128,16], index: 0, kind: input, shape index: {}]
  %s1 = inlined_call_operand.vmem [shape: bf16[128,16], index: 1, kind: input, shape index: {}]
  %s2 = inlined_call_operand.vmem [shape: bf16[128,128], index: 2, kind: input, shape index: {}]
  %s3 = inlined_call_operand.vmem [shape: bf16[128,128], index: 3, kind: input, shape index: {}]
  %s4 = inlined_call_operand.vmem [shape: bf16[128,128], index: 4, kind: input, shape index: {}]
  %s5 = inlined_call_operand.hbm [shape: bf16[8,128], index: 5, kind: input, shape index: {}]
  %s6 = inlined_call_operand.hbm [shape: bf16[8,128], index: 6, kind: input, shape index: {}]
  %s7 = inlined_call_operand.hbm [shape: bf16[8,16], index: 7, kind: input, shape index: {}]
  %s8 = inlined_call_operand.vmem [shape: f32[128,1], index: 8, kind: input, shape index: {}]
  %s9 = inlined_call_operand.vmem [shape: bf16[16,128], index: 9, kind: input, shape index: {}]
  %s10 = inlined_call_operand.vmem [shape: bf16[16,128], index: 10, kind: input, shape index: {}]
  %s11 = inlined_call_operand.vmem [shape: bf16[16,128], index: 11, kind: input, shape index: {}]
  %s12 = inlined_call_operand.vmem [shape: f32[1,128], index: 12, kind: input, shape index: {}]
  %s13 = inlined_call_operand.hbm [shape: f32[1,128], index: 13, kind: input, shape index: {}]
  %s14 = inlined_call_operand.vmem [shape: bf16[128,128], index: 14, kind: input, shape index: {}]
  %s15 = inlined_call_operand.hbm [shape: f32[1,128], index: 15, kind: input, shape index: {}]
  %s16 = inlined_call_operand.vmem [shape: bf16[16,128], index: 16, kind: input, shape index: {}]
  %s17 = inlined_call_operand.vmem [shape: f32[1,128], index: 17, kind: input, shape index: {}]
  %s18 = inlined_call_operand.hbm [shape: f32[128,128], index: 18, kind: output, shape index: {0}]
  %s19 = inlined_call_operand.hbm [shape: f32[8,384], index: 19, kind: output, shape index: {1}]
  %20 = xla_tuple %s18, %s19
  %s21 = sld [smem:[#allocation0]]
  $region110: #{tpu_custom_call.1} parent=0
    _
  %s23 = ssub.s32 1, %s21
  %s24 = scalar_select 0, %s23, %s21
  $region1: #{tpu_custom_call.1} parent=0
    #allocation2 [shape = 'u8[2048]{0}', space=vmem, size = 0x800, scoped, tag = 'input window, operand 5, single buffered']
    #allocation3 [shape = 's32[1]{0}', space=sflag, size = 0x4, scoped, tag = 'scoped memory for tpu_custom_call.1']
    #allocation4 [shape = 's32[1]{0}', space=sflag, size = 0x4, scoped, tag = 'scoped memory for tpu_custom_call.1']
    #allocation5 [shape = 'u8[2048]{0}', space=vmem, size = 0x800, scoped, tag = 'input window, operand 6, single buffered']
    #allocation6 [shape = 's32[1]{0}', space=sflag, size = 0x4, scoped, tag = 'scoped memory for tpu_custom_call.1']
    #allocation7 [shape = 'u8[2048]{0}', space=vmem, size = 0x800, scoped, tag = 'input window, operand 7, single buffered']
    #allocation8 [shape = 'u8[512]{0}', space=vmem, size = 0x400, scoped, tag = 'input window, operand 13, single buffered']
    #allocation9 [shape = 's32[1]{0}', space=sflag, size = 0x4, scoped, tag = 'scoped memory for tpu_custom_call.1']
    #allocation10 [shape = 'u8[512]{0}', space=vmem, size = 0x400, scoped, tag = 'input window, operand 15, single buffered']
    #allocation11 [shape = 'u8[65536]{0}', space=vmem, size = 0x10000, scoped, tag = 'output window, operand 0, single buffered']
    #allocation12 [shape = 'u8[12288]{0}', space=vmem, size = 0x3000, scoped, tag = 'output window, operand 1, single buffered']
    #allocation13 [shape = 's32[1]{0}', space=sflag, size = 0x4, scoped, tag = 'scoped memory for tpu_custom_call.1']
    %25 = vsyncpa [#allocation3], 0
    %26 = vsyncpa [#allocation6], 0
    %27 = vsyncpa [#allocation9], 0
    %28 = vsyncpa [#allocation4], 0
    %29 = vsyncpa [#allocation13], 0
    // Predicated region
    $region2: #{tpu_custom_call.1} parent=1 // pred_check
      _
    $region3: #{tpu_custom_call.1} parent=1 // pred_check_branch
      %31 = sbr.rel (0) target = $region5
    $region4: #{tpu_custom_call.1} parent=1 // pred_region
      _
    $region5: #{tpu_custom_call.1} parent=1 // pred_fallthru
      _
    // Predicated region
    $region6: #{tpu_custom_call.1} parent=1 // pred_check
      _
    $region7: #{tpu_custom_call.1} parent=1 // pred_check_branch
      %33 = sbr.rel (0) target = $region9
    $region8: #{tpu_custom_call.1} parent=1 // pred_region
      _
    $region9: #{tpu_custom_call.1} parent=1 // pred_fallthru
      _
    // Predicated region
    $region10: #{tpu_custom_call.1} parent=1 // pred_check
      _
    $region11: #{tpu_custom_call.1} parent=1 // pred_check_branch
      %35 = sbr.rel (0) target = $region13
    $region12: #{tpu_custom_call.1} parent=1 // pred_region
      _
    $region13: #{tpu_custom_call.1} parent=1 // pred_fallthru
      _
    // Predicated region
    $region14: #{tpu_custom_call.1} parent=1 // pred_check
      _
    $region15: #{tpu_custom_call.1} parent=1 // pred_check_branch
      %37 = sbr.rel (0) target = $region17
    $region16: #{tpu_custom_call.1} parent=1 // pred_region
      _
    $region17: #{tpu_custom_call.1} parent=1 // pred_fallthru
      _
    // Predicated region
    $region18: #{tpu_custom_call.1} parent=1 // pred_check
      _
    $region19: #{tpu_custom_call.1} parent=1 // pred_check_branch
      %39 = sbr.rel (0) target = $region21
    $region20: #{tpu_custom_call.1} parent=1 // pred_region
      _
    $region21: #{tpu_custom_call.1} parent=1 // pred_fallthru
      _
    // Predicated region
    $region22: #{tpu_custom_call.1} parent=1 // pred_check
      _
    $region23: #{tpu_custom_call.1} parent=1 // pred_check_branch
      %41 = sbr.rel (0) target = $region25
    $region24: #{tpu_custom_call.1} parent=1 // pred_region
      %s43 = ssub.s32 64, 64
      %44 = vsyncadd [#allocation3], %s43
      %s46 = sshll.u32 [#allocation2], 4
      %s47 = int_to_ptr.vmem [resolvable:$true] %s46
      %49 = dma.hbm_to_vmem [thread:$0]  %s5, 64, %s47, [#allocation3]
    $region25: #{tpu_custom_call.1} parent=1 // pred_fallthru
      _
    // Predicated region
    $region26: #{tpu_custom_call.1} parent=1 // pred_check
      _
    $region27: #{tpu_custom_call.1} parent=1 // pred_check_branch
      %51 = sbr.rel (0) target = $region29
    $region28: #{tpu_custom_call.1} parent=1 // pred_region
      %s53 = ssub.s32 64, 64
      %54 = vsyncadd [#allocation6], %s53
      %s56 = sshll.u32 [#allocation5], 4
      %s57 = int_to_ptr.vmem [resolvable:$true] %s56
      %59 = dma.hbm_to_vmem [thread:$0]  %s6, 64, %s57, [#allocation6]
    $region29: #{tpu_custom_call.1} parent=1 // pred_fallthru
      _
    // Predicated region
    $region30: #{tpu_custom_call.1} parent=1 // pred_check
      _
    $region31: #{tpu_custom_call.1} parent=1 // pred_check_branch
      %61 = sbr.rel (0) target = $region33
    $region32: #{tpu_custom_call.1} parent=1 // pred_region
      %s63 = ssub.s32 64, 64
      %64 = vsyncadd [#allocation6], %s63
      %s66 = sshll.u32 [#allocation7], 4
      %s67 = int_to_ptr.vmem [resolvable:$true] %s66
      %69 = dma.hbm_to_vmem [thread:$0]  %s7, 64, %s67, [#allocation6]
    $region33: #{tpu_custom_call.1} parent=1 // pred_fallthru
      _
    // Predicated region
    $region34: #{tpu_custom_call.1} parent=1 // pred_check
      _
    $region35: #{tpu_custom_call.1} parent=1 // pred_check_branch
      %71 = sbr.rel (0) target = $region37
    $region36: #{tpu_custom_call.1} parent=1 // pred_region
      _
    $region37: #{tpu_custom_call.1} parent=1 // pred_fallthru
      _
    // Predicated region
    $region38: #{tpu_custom_call.1} parent=1 // pred_check
      _
    $region39: #{tpu_custom_call.1} parent=1 // pred_check_branch
      %73 = sbr.rel (0) target = $region41
    $region40: #{tpu_custom_call.1} parent=1 // pred_region
      _
    $region41: #{tpu_custom_call.1} parent=1 // pred_fallthru
      _
    // Predicated region
    $region42: #{tpu_custom_call.1} parent=1 // pred_check
      _
    $region43: #{tpu_custom_call.1} parent=1 // pred_check_branch
      %75 = sbr.rel (0) target = $region45
    $region44: #{tpu_custom_call.1} parent=1 // pred_region
      _
    $region45: #{tpu_custom_call.1} parent=1 // pred_fallthru
      _
    // Predicated region
    $region46: #{tpu_custom_call.1} parent=1 // pred_check
      _
    $region47: #{tpu_custom_call.1} parent=1 // pred_check_branch
      %77 = sbr.rel (0) target = $region49
    $region48: #{tpu_custom_call.1} parent=1 // pred_region
      _
    $region49: #{tpu_custom_call.1} parent=1 // pred_fallthru
      _
    // Predicated region
    $region50: #{tpu_custom_call.1} parent=1 // pred_check
      _
    $region51: #{tpu_custom_call.1} parent=1 // pred_check_branch
      %79 = sbr.rel (0) target = $region53
    $region52: #{tpu_custom_call.1} parent=1 // pred_region
      _
    $region53: #{tpu_custom_call.1} parent=1 // pred_fallthru
      _
    // Predicated region
    $region54: #{tpu_custom_call.1} parent=1 // pred_check
      _
    $region55: #{tpu_custom_call.1} parent=1 // pred_check_branch
      %81 = sbr.rel (0) target = $region57
    $region56: #{tpu_custom_call.1} parent=1 // pred_region
      %s83 = ssub.s32 16, 16
      %84 = vsyncadd [#allocation9], %s83
      %s86 = sshll.u32 [#allocation8], 4
      %s87 = int_to_ptr.vmem [resolvable:$true] %s86
      %89 = dma.hbm_to_vmem [thread:$0]  %s13, 16, %s87, [#allocation9]
    $region57: #{tpu_custom_call.1} parent=1 // pred_fallthru
      _
    // Predicated region
    $region58: #{tpu_custom_call.1} parent=1 // pred_check
      _
    $region59: #{tpu_custom_call.1} parent=1 // pred_check_branch
      %91 = sbr.rel (0) target = $region61
    $region60: #{tpu_custom_call.1} parent=1 // pred_region
      _
    $region61: #{tpu_custom_call.1} parent=1 // pred_fallthru
      _
    // Predicated region
    $region62: #{tpu_custom_call.1} parent=1 // pred_check
      _
    $region63: #{tpu_custom_call.1} parent=1 // pred_check_branch
      %93 = sbr.rel (0) target = $region65
    $region64: #{tpu_custom_call.1} parent=1 // pred_region
      %s95 = ssub.s32 16, 16
      %96 = vsyncadd [#allocation9], %s95
      %s98 = sshll.u32 [#allocation10], 4
      %s99 = int_to_ptr.vmem [resolvable:$true] %s98
      %101 = dma.hbm_to_vmem [thread:$0]  %s15, 16, %s99, [#allocation9]
    $region65: #{tpu_custom_call.1} parent=1 // pred_fallthru
      _
    // Predicated region
    $region66: #{tpu_custom_call.1} parent=1 // pred_check
      _
    $region67: #{tpu_custom_call.1} parent=1 // pred_check_branch
      %103 = sbr.rel (0) target = $region69
    $region68: #{tpu_custom_call.1} parent=1 // pred_region
      _
    $region69: #{tpu_custom_call.1} parent=1 // pred_fallthru
      _
    // Predicated region
    $region70: #{tpu_custom_call.1} parent=1 // pred_check
      _
    $region71: #{tpu_custom_call.1} parent=1 // pred_check_branch
      %105 = sbr.rel (0) target = $region73
    $region72: #{tpu_custom_call.1} parent=1 // pred_region
      _
    $region73: #{tpu_custom_call.1} parent=1 // pred_fallthru
      _
    // Predicated region
    $region74: #{tpu_custom_call.1} parent=1 // pred_check
      _
    $region75: #{tpu_custom_call.1} parent=1 // pred_check_branch
      %107 = sbr.rel (0) target = $region77
    $region76: #{tpu_custom_call.1} parent=1 // pred_region
      %108 = dma.done [#allocation3], 64
    $region77: #{tpu_custom_call.1} parent=1 // pred_fallthru
      _
    // Predicated region
    $region78: #{tpu_custom_call.1} parent=1 // pred_check
      _
    $region79: #{tpu_custom_call.1} parent=1 // pred_check_branch
      %110 = sbr.rel (0) target = $region81
    $region80: #{tpu_custom_call.1} parent=1 // pred_region
      %111 = dma.done [#allocation6], 64
    $region81: #{tpu_custom_call.1} parent=1 // pred_fallthru
      _
    // Predicated region
    $region82: #{tpu_custom_call.1} parent=1 // pred_check
      _
    $region83: #{tpu_custom_call.1} parent=1 // pred_check_branch
      %113 = sbr.rel (0) target = $region85
    $region84: #{tpu_custom_call.1} parent=1 // pred_region
      %114 = dma.done [#allocation6], 64
    $region85: #{tpu_custom_call.1} parent=1 // pred_fallthru
      _
    // Predicated region
    $region86: #{tpu_custom_call.1} parent=1 // pred_check
      _
    $region87: #{tpu_custom_call.1} parent=1 // pred_check_branch
      %116 = sbr.rel (0) target = $region89
    $region88: #{tpu_custom_call.1} parent=1 // pred_region
      %117 = dma.done [#allocation9], 16
    $region89: #{tpu_custom_call.1} parent=1 // pred_fallthru
      _
    // Predicated region
    $region90: #{tpu_custom_call.1} parent=1 // pred_check
      _
    $region91: #{tpu_custom_call.1} parent=1 // pred_check_branch
      %119 = sbr.rel (0) target = $region93
    $region92: #{tpu_custom_call.1} parent=1 // pred_region
      %120 = dma.done [#allocation9], 16
    $region93: #{tpu_custom_call.1} parent=1 // pred_fallthru
      _
    %v122 = vld [vmem:[%s0] sm:$0xf]
    %v123 = vld [vmem:[%s0 + $0x4] sm:$0xf]
    %v124 = vld [vmem:[%s0 + $0x8] sm:$0xf]
    %v125 = vld [vmem:[%s0 + $0xc] sm:$0xf]
    %v126 = vld [vmem:[%s0 + $0x10] sm:$0xf]
    %v127 = vld [vmem:[%s0 + $0x14] sm:$0xf]
    %v128 = vld [vmem:[%s0 + $0x18] sm:$0xf]
    %v129 = vld [vmem:[%s0 + $0x1c] sm:$0xf]
    %v130 = vld [vmem:[%s0 + $0x20] sm:$0xf]
    %v131 = vld [vmem:[%s0 + $0x24] sm:$0xf]
    %v132 = vld [vmem:[%s0 + $0x28] sm:$0xf]
    %v133 = vld [vmem:[%s0 + $0x2c] sm:$0xf]
    %v134 = vld [vmem:[%s0 + $0x30] sm:$0xf]
    %v135 = vld [vmem:[%s0 + $0x34] sm:$0xf]
    %v136 = vld [vmem:[%s0 + $0x38] sm:$0xf]
    %v137 = vld [vmem:[%s0 + $0x3c] sm:$0xf]
    %v138 = vld [vmem:[%s9] sm:$0xf]
    %v139 = vld [vmem:[%s9 + $0x4] sm:$0xf]
    %v156 = vunpack.c.l.b16 %v122
    %v157 = vunpack.c.l.b16 %v123
    %v158 = vunpack.c.l.b16 %v124
    %v159 = vunpack.c.l.b16 %v125
    %v160 = vunpack.c.l.b16 %v126
    %v161 = vunpack.c.l.b16 %v127
    %v162 = vunpack.c.l.b16 %v128
    %v163 = vunpack.c.l.b16 %v129
    %v164 = vunpack.c.l.b16 %v130
    %v165 = vunpack.c.l.b16 %v131
    %v166 = vunpack.c.l.b16 %v132
    %v167 = vunpack.c.l.b16 %v133
    %v168 = vunpack.c.l.b16 %v134
    %v169 = vunpack.c.l.b16 %v135
    %v170 = vunpack.c.l.b16 %v136
    %v171 = vunpack.c.l.b16 %v137
    %v172 = vpack.c.b16 %v157, %v156
    %v173 = vpack.c.b16 %v159, %v158
    %v174 = vpack.c.b16 %v161, %v160
    %v175 = vpack.c.b16 %v163, %v162
    %v176 = vpack.c.b16 %v165, %v164
    %v177 = vpack.c.b16 %v167, %v166
    %v178 = vpack.c.b16 %v169, %v168
    %v179 = vpack.c.b16 %v171, %v170
    %v182 = vunpack.c.l.b16 %v138
    %v183 = vunpack.c.l.b16 %v139
    %v184 = vpack.c.b16 %v183, %v182
    %vm186 = vcmask 130048
    %v188 = vsel %vm186, %v172, 0
    %v191 = vsel %vm186, %v173, 0
    %v194 = vsel %vm186, %v174, 0
    %v197 = vsel %vm186, %v175, 0
    %v200 = vsel %vm186, %v176, 0
    %v203 = vsel %vm186, %v177, 0
    %v206 = vsel %vm186, %v178, 0
    %v209 = vsel %vm186, %v179, 0
    %211 = vmatprep.subr.bf16.mxu0 0
    %212 = vmatpush1.bf16.msra.mxu0 0
    %213 = vmatprep.subr.bf16.mxu0 0
    %214 = vmatpush1.bf16.msra.mxu0 0
    %215 = vmatprep.subr.bf16.mxu0 0
    %216 = vmatpush1.bf16.msra.mxu0 0
    %217 = vmatprep.subr.bf16.mxu0 0
    %218 = vmatpush1.bf16.msra.mxu0 0
    %219 = vmatprep.subr.bf16.mxu0 0
    %220 = vmatpush1.bf16.msra.mxu0 0
    %221 = vmatprep.subr.bf16.mxu0 0
    %222 = vmatpush1.bf16.msra.mxu0 0
    %223 = vmatprep.subr.bf16.mxu0 0
    %224 = vmatpush1.bf16.msra.mxu0 0
    %225 = vmatprep.subr.bf16.mxu0 0
    %226 = vmatpush1.bf16.msra.mxu0 %v184
    %227 = vmatprep.subr.bf16.mxu0 0
    %228 = vmatpush2.bf16.msra.mxu0 0
    %229 = vmatprep.subr.bf16.mxu0 0
    %230 = vmatpush2.bf16.msra.mxu0 0
    %231 = vmatprep.subr.bf16.mxu0 0
    %232 = vmatpush2.bf16.msra.mxu0 0
    %233 = vmatprep.subr.bf16.mxu0 0
    %234 = vmatpush2.bf16.msra.mxu0 0
    %235 = vmatprep.subr.bf16.mxu0 0
    %236 = vmatpush2.bf16.msra.mxu0 0
    %237 = vmatprep.subr.bf16.mxu0 0
    %238 = vmatpush2.bf16.msra.mxu0 0
    %239 = vmatprep.subr.bf16.mxu0 0
    %240 = vmatpush2.bf16.msra.mxu0 0
    %241 = vmatprep.subr.bf16.mxu0 0
    %242 = vmatpush2.bf16.msra.mxu0 0
    %243 = vmatprep.mubr.bf16.mxu0 0
    %244 = vmatmul.mubr.bf16.gmra.mxu0 %v188
    %v245 = vpop.f32.mrf.mxu0
    %v246 = vadd.f32 0.0, %v245
    %v247 = vpop.f32.mrf.mxu0
    %v248 = vpop.f32.mrf.mxu0
    %v249 = vadd.f32 0.0, %v248
    %v250 = vpop.f32.mrf.mxu0
    %251 = vmatprep.mubr.bf16.mxu0 0
    %252 = vmatmul.mubr.bf16.gmra.mxu0 %v191
    %v253 = vpop.f32.mrf.mxu0
    %v254 = vadd.f32 0.0, %v253
    %v255 = vpop.f32.mrf.mxu0
    %v256 = vpop.f32.mrf.mxu0
    %v257 = vadd.f32 0.0, %v256
    %v258 = vpop.f32.mrf.mxu0
    %259 = vmatprep.mubr.bf16.mxu0 0
    %260 = vmatmul.mubr.bf16.gmra.mxu0 %v194
    %v261 = vpop.f32.mrf.mxu0
    %v262 = vadd.f32 0.0, %v261
    %v263 = vpop.f32.mrf.mxu0
    %v264 = vpop.f32.mrf.mxu0
    %v265 = vadd.f32 0.0, %v264
    %v266 = vpop.f32.mrf.mxu0
    %267 = vmatprep.mubr.bf16.mxu0 0
    %268 = vmatmul.mubr.bf16.gmra.mxu0 %v197
    %v269 = vpop.f32.mrf.mxu0
    %v270 = vadd.f32 0.0, %v269
    %v271 = vpop.f32.mrf.mxu0
    %v272 = vpop.f32.mrf.mxu0
    %v273 = vadd.f32 0.0, %v272
    %v274 = vpop.f32.mrf.mxu0
    %275 = vmatprep.mubr.bf16.mxu0 0
    %276 = vmatmul.mubr.bf16.gmra.mxu0 %v200
    %v277 = vpop.f32.mrf.mxu0
    %v278 = vadd.f32 0.0, %v277
    %v279 = vpop.f32.mrf.mxu0
    %v280 = vpop.f32.mrf.mxu0
    %v281 = vadd.f32 0.0, %v280
    %v282 = vpop.f32.mrf.mxu0
    %283 = vmatprep.mubr.bf16.mxu0 0
    %284 = vmatmul.mubr.bf16.gmra.mxu0 %v203
    %v285 = vpop.f32.mrf.mxu0
    %v286 = vadd.f32 0.0, %v285
    %v287 = vpop.f32.mrf.mxu0
    %v288 = vpop.f32.mrf.mxu0
    %v289 = vadd.f32 0.0, %v288
    %v290 = vpop.f32.mrf.mxu0
    %291 = vmatprep.mubr.bf16.mxu0 0
    %292 = vmatmul.mubr.bf16.gmra.mxu0 %v206
    %v293 = vpop.f32.mrf.mxu0
    %v294 = vadd.f32 0.0, %v293
    %v295 = vpop.f32.mrf.mxu0
    %v296 = vpop.f32.mrf.mxu0
    %v297 = vadd.f32 0.0, %v296
    %v298 = vpop.f32.mrf.mxu0
    %299 = vmatprep.mubr.bf16.mxu0 0
    %300 = vmatmul.mubr.bf16.gmra.mxu0 %v209
    %v301 = vpop.f32.mrf.mxu0
    %v302 = vadd.f32 0.0, %v301
    %v303 = vpop.f32.mrf.mxu0
    %v304 = vpop.f32.mrf.mxu0
    %v305 = vadd.f32 0.0, %v304
    %v306 = vpop.f32.mrf.mxu0
    %307 = vdwg.mxu0
    %v308 = vld [vmem:[%s10] sm:$0xf]
    %v309 = vld [vmem:[%s10 + $0x4] sm:$0xf]
    %v312 = vunpack.c.l.b16 %v308
    %v313 = vunpack.c.l.b16 %v309
    %v314 = vpack.c.b16 %v313, %v312
    %316 = vmatprep.subr.bf16.mxu0 0
    %317 = vmatpush1.bf16.msra.mxu0 0
    %318 = vmatprep.subr.bf16.mxu0 0
    %319 = vmatpush1.bf16.msra.mxu0 0
    %320 = vmatprep.subr.bf16.mxu0 0
    %321 = vmatpush1.bf16.msra.mxu0 0
    %322 = vmatprep.subr.bf16.mxu0 0
    %323 = vmatpush1.bf16.msra.mxu0 0
    %324 = vmatprep.subr.bf16.mxu0 0
    %325 = vmatpush1.bf16.msra.mxu0 0
    %326 = vmatprep.subr.bf16.mxu0 0
    %327 = vmatpush1.bf16.msra.mxu0 0
    %328 = vmatprep.subr.bf16.mxu0 0
    %329 = vmatpush1.bf16.msra.mxu0 0
    %330 = vmatprep.subr.bf16.mxu0 0
    %331 = vmatpush1.bf16.msra.mxu0 %v314
    %332 = vmatprep.subr.bf16.mxu0 0
    %333 = vmatpush2.bf16.msra.mxu0 0
    %334 = vmatprep.subr.bf16.mxu0 0
    %335 = vmatpush2.bf16.msra.mxu0 0
    %336 = vmatprep.subr.bf16.mxu0 0
    %337 = vmatpush2.bf16.msra.mxu0 0
    %338 = vmatprep.subr.bf16.mxu0 0
    %339 = vmatpush2.bf16.msra.mxu0 0
    %340 = vmatprep.subr.bf16.mxu0 0
    %341 = vmatpush2.bf16.msra.mxu0 0
    %342 = vmatprep.subr.bf16.mxu0 0
    %343 = vmatpush2.bf16.msra.mxu0 0
    %344 = vmatprep.subr.bf16.mxu0 0
    %345 = vmatpush2.bf16.msra.mxu0 0
    %346 = vmatprep.subr.bf16.mxu0 0
    %347 = vmatpush2.bf16.msra.mxu0 0
    %348 = vmatprep.mubr.bf16.mxu0 0
    %349 = vmatmul.mubr.bf16.gmra.mxu0 %v188
    %v350 = vpop.f32.mrf.mxu0
    %v351 = vadd.f32 0.0, %v350
    %v352 = vpop.f32.mrf.mxu0
    %v353 = vpop.f32.mrf.mxu0
    %v354 = vadd.f32 0.0, %v353
    %v355 = vpop.f32.mrf.mxu0
    %356 = vmatprep.mubr.bf16.mxu0 0
    %357 = vmatmul.mubr.bf16.gmra.mxu0 %v191
    %v358 = vpop.f32.mrf.mxu0
    %v359 = vadd.f32 0.0, %v358
    %v360 = vpop.f32.mrf.mxu0
    %v361 = vpop.f32.mrf.mxu0
    %v362 = vadd.f32 0.0, %v361
    %v363 = vpop.f32.mrf.mxu0
    %364 = vmatprep.mubr.bf16.mxu0 0
    %365 = vmatmul.mubr.bf16.gmra.mxu0 %v194
    %v366 = vpop.f32.mrf.mxu0
    %v367 = vadd.f32 0.0, %v366
    %v368 = vpop.f32.mrf.mxu0
    %v369 = vpop.f32.mrf.mxu0
    %v370 = vadd.f32 0.0, %v369
    %v371 = vpop.f32.mrf.mxu0
    %372 = vmatprep.mubr.bf16.mxu0 0
    %373 = vmatmul.mubr.bf16.gmra.mxu0 %v197
    %v374 = vpop.f32.mrf.mxu0
    %v375 = vadd.f32 0.0, %v374
    %v376 = vpop.f32.mrf.mxu0
    %v377 = vpop.f32.mrf.mxu0
    %v378 = vadd.f32 0.0, %v377
    %v379 = vpop.f32.mrf.mxu0
    %380 = vmatprep.mubr.bf16.mxu0 0
    %381 = vmatmul.mubr.bf16.gmra.mxu0 %v200
    %v382 = vpop.f32.mrf.mxu0
    %v383 = vadd.f32 0.0, %v382
    %v384 = vpop.f32.mrf.mxu0
    %v385 = vpop.f32.mrf.mxu0
    %v386 = vadd.f32 0.0, %v385
    %v387 = vpop.f32.mrf.mxu0
    %388 = vmatprep.mubr.bf16.mxu0 0
    %389 = vmatmul.mubr.bf16.gmra.mxu0 %v203
    %v390 = vpop.f32.mrf.mxu0
    %v391 = vadd.f32 0.0, %v390
    %v392 = vpop.f32.mrf.mxu0
    %v393 = vpop.f32.mrf.mxu0
    %v394 = vadd.f32 0.0, %v393
    %v395 = vpop.f32.mrf.mxu0
    %396 = vmatprep.mubr.bf16.mxu0 0
    %397 = vmatmul.mubr.bf16.gmra.mxu0 %v206
    %v398 = vpop.f32.mrf.mxu0
    %v399 = vadd.f32 0.0, %v398
    %v400 = vpop.f32.mrf.mxu0
    %v401 = vpop.f32.mrf.mxu0
    %v402 = vadd.f32 0.0, %v401
    %v403 = vpop.f32.mrf.mxu0
    %404 = vmatprep.mubr.bf16.mxu0 0
    %405 = vmatmul.mubr.bf16.gmra.mxu0 %v209
    %v406 = vpop.f32.mrf.mxu0
    %v407 = vadd.f32 0.0, %v406
    %v408 = vpop.f32.mrf.mxu0
    %v409 = vpop.f32.mrf.mxu0
    %v410 = vadd.f32 0.0, %v409
    %v411 = vpop.f32.mrf.mxu0
    %412 = vdwg.mxu0
    %v413 = vld [vmem:[%s3] sm:$0xf]
    %v414 = vld [vmem:[%s3 + $0x4] sm:$0xf]
    %v415 = vld [vmem:[%s3 + $0x8] sm:$0xf]
    %v416 = vld [vmem:[%s3 + $0xc] sm:$0xf]
    %v417 = vld [vmem:[%s3 + $0x10] sm:$0xf]
    %v418 = vld [vmem:[%s3 + $0x14] sm:$0xf]
    %v419 = vld [vmem:[%s3 + $0x18] sm:$0xf]
    %v420 = vld [vmem:[%s3 + $0x1c] sm:$0xf]
    %v421 = vld [vmem:[%s3 + $0x20] sm:$0xf]
    %v422 = vld [vmem:[%s3 + $0x24] sm:$0xf]
    %v423 = vld [vmem:[%s3 + $0x28] sm:$0xf]
    %v424 = vld [vmem:[%s3 + $0x2c] sm:$0xf]
    %v425 = vld [vmem:[%s3 + $0x30] sm:$0xf]
    %v426 = vld [vmem:[%s3 + $0x34] sm:$0xf]
    %v427 = vld [vmem:[%s3 + $0x38] sm:$0xf]
    %v428 = vld [vmem:[%s3 + $0x3c] sm:$0xf]
    %v429 = vpack.c.bf16 %v249, %v246
    %v430 = vpack.c.bf16 %v257, %v254
    %v431 = vpack.c.bf16 %v265, %v262
    %v432 = vpack.c.bf16 %v273, %v270
    %v433 = vpack.c.bf16 %v281, %v278
    %v434 = vpack.c.bf16 %v289, %v286
    %v435 = vpack.c.bf16 %v297, %v294
    %v436 = vpack.c.bf16 %v305, %v302
    %v437 = vld [vmem:[%s4] sm:$0xf]
    %v438 = vld [vmem:[%s4 + $0x4] sm:$0xf]
    %v439 = vld [vmem:[%s4 + $0x8] sm:$0xf]
    %v440 = vld [vmem:[%s4 + $0xc] sm:$0xf]
    %v441 = vld [vmem:[%s4 + $0x10] sm:$0xf]
    %v442 = vld [vmem:[%s4 + $0x14] sm:$0xf]
    %v443 = vld [vmem:[%s4 + $0x18] sm:$0xf]
    %v444 = vld [vmem:[%s4 + $0x1c] sm:$0xf]
    %v445 = vld [vmem:[%s4 + $0x20] sm:$0xf]
    %v446 = vld [vmem:[%s4 + $0x24] sm:$0xf]
    %v447 = vld [vmem:[%s4 + $0x28] sm:$0xf]
    %v448 = vld [vmem:[%s4 + $0x2c] sm:$0xf]
    %v449 = vld [vmem:[%s4 + $0x30] sm:$0xf]
    %v450 = vld [vmem:[%s4 + $0x34] sm:$0xf]
    %v451 = vld [vmem:[%s4 + $0x38] sm:$0xf]
    %v452 = vld [vmem:[%s4 + $0x3c] sm:$0xf]
    %v453 = vpack.c.bf16 %v354, %v351
    %v454 = vpack.c.bf16 %v362, %v359
    %v455 = vpack.c.bf16 %v370, %v367
    %v456 = vpack.c.bf16 %v378, %v375
    %v457 = vpack.c.bf16 %v386, %v383
    %v458 = vpack.c.bf16 %v394, %v391
    %v459 = vpack.c.bf16 %v402, %v399
    %v460 = vpack.c.bf16 %v410, %v407
    %v477 = vunpack.c.l.b16 %v437
    %v478 = vunpack.c.l.b16 %v438
    %v479 = vunpack.c.l.b16 %v439
    %v480 = vunpack.c.l.b16 %v440
    %v481 = vunpack.c.l.b16 %v441
    %v482 = vunpack.c.l.b16 %v442
    %v483 = vunpack.c.l.b16 %v443
    %v484 = vunpack.c.l.b16 %v444
    %v485 = vunpack.c.l.b16 %v445
    %v486 = vunpack.c.l.b16 %v446
    %v487 = vunpack.c.l.b16 %v447
    %v488 = vunpack.c.l.b16 %v448
    %v489 = vunpack.c.l.b16 %v449
    %v490 = vunpack.c.l.b16 %v450
    %v491 = vunpack.c.l.b16 %v451
    %v492 = vunpack.c.l.b16 %v452
    %v493 = vpack.c.b16 %v478, %v477
    %v494 = vpack.c.b16 %v480, %v479
    %v495 = vpack.c.b16 %v482, %v481
    %v496 = vpack.c.b16 %v484, %v483
    %v497 = vpack.c.b16 %v486, %v485
    %v498 = vpack.c.b16 %v488, %v487
    %v499 = vpack.c.b16 %v490, %v489
    %v500 = vpack.c.b16 %v492, %v491
    %509 = vmatprep.subr.bf16.mxu0 0
    %510 = vmatpush1.bf16.msra.mxu0 %v460
    %511 = vmatprep.subr.bf16.mxu0 0
    %512 = vmatpush1.bf16.msra.mxu0 %v459
    %513 = vmatprep.subr.bf16.mxu0 0
    %514 = vmatpush1.bf16.msra.mxu0 %v458
    %515 = vmatprep.subr.bf16.mxu0 0
    %516 = vmatpush1.bf16.msra.mxu0 %v457
    %517 = vmatprep.subr.bf16.mxu0 0
    %518 = vmatpush1.bf16.msra.mxu0 %v456
    %519 = vmatprep.subr.bf16.mxu0 0
    %520 = vmatpush1.bf16.msra.mxu0 %v455
    %521 = vmatprep.subr.bf16.mxu0 0
    %522 = vmatpush1.bf16.msra.mxu0 %v454
    %523 = vmatprep.subr.bf16.mxu0 0
    %524 = vmatpush1.bf16.msra.mxu0 %v453
    %525 = vmatprep.subr.bf16.mxu0 0
    %526 = vmatpush2.bf16.msra.mxu0 0
    %527 = vmatprep.subr.bf16.mxu0 0
    %528 = vmatpush2.bf16.msra.mxu0 0
    %529 = vmatprep.subr.bf16.mxu0 0
    %530 = vmatpush2.bf16.msra.mxu0 0
    %531 = vmatprep.subr.bf16.mxu0 0
    %532 = vmatpush2.bf16.msra.mxu0 0
    %533 = vmatprep.subr.bf16.mxu0 0
    %534 = vmatpush2.bf16.msra.mxu0 0
    %535 = vmatprep.subr.bf16.mxu0 0
    %536 = vmatpush2.bf16.msra.mxu0 0
    %537 = vmatprep.subr.bf16.mxu0 0
    %538 = vmatpush2.bf16.msra.mxu0 0
    %539 = vmatprep.subr.bf16.mxu0 0
    %540 = vmatpush2.bf16.msra.mxu0 0
    %541 = vmatprep.mubr.bf16.mxu0 0
    %542 = vmatmul.mubr.bf16.gmra.mxu0 %v493
    %v543 = vpop.f32.mrf.mxu0
    %v544 = vadd.f32 0.0, %v543
    %v545 = vpop.f32.mrf.mxu0
    %v546 = vpop.f32.mrf.mxu0
    %v547 = vadd.f32 0.0, %v546
    %v548 = vpop.f32.mrf.mxu0
    %549 = vmatprep.mubr.bf16.mxu0 0
    %550 = vmatmul.mubr.bf16.gmra.mxu0 %v494
    %v551 = vpop.f32.mrf.mxu0
    %v552 = vadd.f32 0.0, %v551
    %v553 = vpop.f32.mrf.mxu0
    %v554 = vpop.f32.mrf.mxu0
    %v555 = vadd.f32 0.0, %v554
    %v556 = vpop.f32.mrf.mxu0
    %557 = vmatprep.mubr.bf16.mxu0 0
    %558 = vmatmul.mubr.bf16.gmra.mxu0 %v495
    %v559 = vpop.f32.mrf.mxu0
    %v560 = vadd.f32 0.0, %v559
    %v561 = vpop.f32.mrf.mxu0
    %v562 = vpop.f32.mrf.mxu0
    %v563 = vadd.f32 0.0, %v562
    %v564 = vpop.f32.mrf.mxu0
    %565 = vmatprep.mubr.bf16.mxu0 0
    %566 = vmatmul.mubr.bf16.gmra.mxu0 %v496
    %v567 = vpop.f32.mrf.mxu0
    %v568 = vadd.f32 0.0, %v567
    %v569 = vpop.f32.mrf.mxu0
    %v570 = vpop.f32.mrf.mxu0
    %v571 = vadd.f32 0.0, %v570
    %v572 = vpop.f32.mrf.mxu0
    %573 = vmatprep.mubr.bf16.mxu0 0
    %574 = vmatmul.mubr.bf16.gmra.mxu0 %v497
    %v575 = vpop.f32.mrf.mxu0
    %v576 = vadd.f32 0.0, %v575
    %v577 = vpop.f32.mrf.mxu0
    %v578 = vpop.f32.mrf.mxu0
    %v579 = vadd.f32 0.0, %v578
    %v580 = vpop.f32.mrf.mxu0
    %581 = vmatprep.mubr.bf16.mxu0 0
    %582 = vmatmul.mubr.bf16.gmra.mxu0 %v498
    %v583 = vpop.f32.mrf.mxu0
    %v584 = vadd.f32 0.0, %v583
    %v585 = vpop.f32.mrf.mxu0
    %v586 = vpop.f32.mrf.mxu0
    %v587 = vadd.f32 0.0, %v586
    %v588 = vpop.f32.mrf.mxu0
    %589 = vmatprep.mubr.bf16.mxu0 0
    %590 = vmatmul.mubr.bf16.gmra.mxu0 %v499
    %v591 = vpop.f32.mrf.mxu0
    %v592 = vadd.f32 0.0, %v591
    %v593 = vpop.f32.mrf.mxu0
    %v594 = vpop.f32.mrf.mxu0
    %v595 = vadd.f32 0.0, %v594
    %v596 = vpop.f32.mrf.mxu0
    %597 = vmatprep.mubr.bf16.mxu0 0
    %598 = vmatmul.mubr.bf16.gmra.mxu0 %v500
    %v599 = vpop.f32.mrf.mxu0
    %v600 = vadd.f32 0.0, %v599
    %v601 = vpop.f32.mrf.mxu0
    %v602 = vpop.f32.mrf.mxu0
    %v603 = vadd.f32 0.0, %v602
    %v604 = vpop.f32.mrf.mxu0
    %605 = vdwg.mxu0
    %v622 = vunpack.c.l.b16 %v413
    %v623 = vunpack.c.l.b16 %v414
    %v624 = vunpack.c.l.b16 %v415
    %v625 = vunpack.c.l.b16 %v416
    %v626 = vunpack.c.l.b16 %v417
    %v627 = vunpack.c.l.b16 %v418
    %v628 = vunpack.c.l.b16 %v419
    %v629 = vunpack.c.l.b16 %v420
    %v630 = vunpack.c.l.b16 %v421
    %v631 = vunpack.c.l.b16 %v422
    %v632 = vunpack.c.l.b16 %v423
    %v633 = vunpack.c.l.b16 %v424
    %v634 = vunpack.c.l.b16 %v425
    %v635 = vunpack.c.l.b16 %v426
    %v636 = vunpack.c.l.b16 %v427
    %v637 = vunpack.c.l.b16 %v428
    %v638 = vpack.c.b16 %v623, %v622
    %v639 = vpack.c.b16 %v625, %v624
    %v640 = vpack.c.b16 %v627, %v626
    %v641 = vpack.c.b16 %v629, %v628
    %v642 = vpack.c.b16 %v631, %v630
    %v643 = vpack.c.b16 %v633, %v632
    %v644 = vpack.c.b16 %v635, %v634
    %v645 = vpack.c.b16 %v637, %v636
    %654 = vmatprep.subr.bf16.mxu0 0
    %655 = vmatpush1.bf16.msra.mxu0 %v436
    %656 = vmatprep.subr.bf16.mxu0 0
    %657 = vmatpush1.bf16.msra.mxu0 %v435
    %658 = vmatprep.subr.bf16.mxu0 0
    %659 = vmatpush1.bf16.msra.mxu0 %v434
    %660 = vmatprep.subr.bf16.mxu0 0
    %661 = vmatpush1.bf16.msra.mxu0 %v433
    %662 = vmatprep.subr.bf16.mxu0 0
    %663 = vmatpush1.bf16.msra.mxu0 %v432
    %664 = vmatprep.subr.bf16.mxu0 0
    %665 = vmatpush1.bf16.msra.mxu0 %v431
    %666 = vmatprep.subr.bf16.mxu0 0
    %667 = vmatpush1.bf16.msra.mxu0 %v430
    %668 = vmatprep.subr.bf16.mxu0 0
    %669 = vmatpush1.bf16.msra.mxu0 %v429
    %670 = vmatprep.subr.bf16.mxu0 0
    %671 = vmatpush2.bf16.msra.mxu0 0
    %672 = vmatprep.subr.bf16.mxu0 0
    %673 = vmatpush2.bf16.msra.mxu0 0
    %674 = vmatprep.subr.bf16.mxu0 0
    %675 = vmatpush2.bf16.msra.mxu0 0
    %676 = vmatprep.subr.bf16.mxu0 0
    %677 = vmatpush2.bf16.msra.mxu0 0
    %678 = vmatprep.subr.bf16.mxu0 0
    %679 = vmatpush2.bf16.msra.mxu0 0
    %680 = vmatprep.subr.bf16.mxu0 0
    %681 = vmatpush2.bf16.msra.mxu0 0
    %682 = vmatprep.subr.bf16.mxu0 0
    %683 = vmatpush2.bf16.msra.mxu0 0
    %684 = vmatprep.subr.bf16.mxu0 0
    %685 = vmatpush2.bf16.msra.mxu0 0
    %686 = vmatprep.mubr.bf16.mxu0 0
    %687 = vmatmul.mubr.bf16.gmra.mxu0 %v638
    %v688 = vpop.f32.mrf.mxu0
    %v689 = vadd.f32 %v544, %v688
    %v690 = vpop.f32.mrf.mxu0
    %v691 = vpop.f32.mrf.mxu0
    %v692 = vadd.f32 %v547, %v691
    %v693 = vpop.f32.mrf.mxu0
    %694 = vmatprep.mubr.bf16.mxu0 0
    %695 = vmatmul.mubr.bf16.gmra.mxu0 %v639
    %v696 = vpop.f32.mrf.mxu0
    %v697 = vadd.f32 %v552, %v696
    %v698 = vpop.f32.mrf.mxu0
    %v699 = vpop.f32.mrf.mxu0
    %v700 = vadd.f32 %v555, %v699
    %v701 = vpop.f32.mrf.mxu0
    %702 = vmatprep.mubr.bf16.mxu0 0
    %703 = vmatmul.mubr.bf16.gmra.mxu0 %v640
    %v704 = vpop.f32.mrf.mxu0
    %v705 = vadd.f32 %v560, %v704
    %v706 = vpop.f32.mrf.mxu0
    %v707 = vpop.f32.mrf.mxu0
    %v708 = vadd.f32 %v563, %v707
    %v709 = vpop.f32.mrf.mxu0
    %710 = vmatprep.mubr.bf16.mxu0 0
    %711 = vmatmul.mubr.bf16.gmra.mxu0 %v641
    %v712 = vpop.f32.mrf.mxu0
    %v713 = vadd.f32 %v568, %v712
    %v714 = vpop.f32.mrf.mxu0
    %v715 = vpop.f32.mrf.mxu0
    %v716 = vadd.f32 %v571, %v715
    %v717 = vpop.f32.mrf.mxu0
    %718 = vmatprep.mubr.bf16.mxu0 0
    %719 = vmatmul.mubr.bf16.gmra.mxu0 %v642
    %v720 = vpop.f32.mrf.mxu0
    %v721 = vadd.f32 %v576, %v720
    %v722 = vpop.f32.mrf.mxu0
    %v723 = vpop.f32.mrf.mxu0
    %v724 = vadd.f32 %v579, %v723
    %v725 = vpop.f32.mrf.mxu0
    %726 = vmatprep.mubr.bf16.mxu0 0
    %727 = vmatmul.mubr.bf16.gmra.mxu0 %v643
    %v728 = vpop.f32.mrf.mxu0
    %v729 = vadd.f32 %v584, %v728
    %v730 = vpop.f32.mrf.mxu0
    %v731 = vpop.f32.mrf.mxu0
    %v732 = vadd.f32 %v587, %v731
    %v733 = vpop.f32.mrf.mxu0
    %734 = vmatprep.mubr.bf16.mxu0 0
    %735 = vmatmul.mubr.bf16.gmra.mxu0 %v644
    %v736 = vpop.f32.mrf.mxu0
    %v737 = vadd.f32 %v592, %v736
    %v738 = vpop.f32.mrf.mxu0
    %v739 = vpop.f32.mrf.mxu0
    %v740 = vadd.f32 %v595, %v739
    %v741 = vpop.f32.mrf.mxu0
    %742 = vmatprep.mubr.bf16.mxu0 0
    %743 = vmatmul.mubr.bf16.gmra.mxu0 %v645
    %v744 = vpop.f32.mrf.mxu0
    %v745 = vadd.f32 %v600, %v744
    %v746 = vpop.f32.mrf.mxu0
    %v747 = vpop.f32.mrf.mxu0
    %v748 = vadd.f32 %v603, %v747
    %v749 = vpop.f32.mrf.mxu0
    %750 = vdwg.mxu0
    %v751 = vld [vmem:[%s1] sm:$0xf]
    %v752 = vld [vmem:[%s1 + $0x4] sm:$0xf]
    %v753 = vld [vmem:[%s1 + $0x8] sm:$0xf]
    %v754 = vld [vmem:[%s1 + $0xc] sm:$0xf]
    %v755 = vld [vmem:[%s1 + $0x10] sm:$0xf]
    %v756 = vld [vmem:[%s1 + $0x14] sm:$0xf]
    %v757 = vld [vmem:[%s1 + $0x18] sm:$0xf]
    %v758 = vld [vmem:[%s1 + $0x1c] sm:$0xf]
    %v759 = vld [vmem:[%s1 + $0x20] sm:$0xf]
    %v760 = vld [vmem:[%s1 + $0x24] sm:$0xf]
    %v761 = vld [vmem:[%s1 + $0x28] sm:$0xf]
    %v762 = vld [vmem:[%s1 + $0x2c] sm:$0xf]
    %v763 = vld [vmem:[%s1 + $0x30] sm:$0xf]
    %v764 = vld [vmem:[%s1 + $0x34] sm:$0xf]
    %v765 = vld [vmem:[%s1 + $0x38] sm:$0xf]
    %v766 = vld [vmem:[%s1 + $0x3c] sm:$0xf]
    %v767 = vld [vmem:[%s11] sm:$0xf]
    %v768 = vld [vmem:[%s11 + $0x4] sm:$0xf]
    %v785 = vunpack.c.l.b16 %v751
    %v786 = vunpack.c.l.b16 %v752
    %v787 = vunpack.c.l.b16 %v753
    %v788 = vunpack.c.l.b16 %v754
    %v789 = vunpack.c.l.b16 %v755
    %v790 = vunpack.c.l.b16 %v756
    %v791 = vunpack.c.l.b16 %v757
    %v792 = vunpack.c.l.b16 %v758
    %v793 = vunpack.c.l.b16 %v759
    %v794 = vunpack.c.l.b16 %v760
    %v795 = vunpack.c.l.b16 %v761
    %v796 = vunpack.c.l.b16 %v762
    %v797 = vunpack.c.l.b16 %v763
    %v798 = vunpack.c.l.b16 %v764
    %v799 = vunpack.c.l.b16 %v765
    %v800 = vunpack.c.l.b16 %v766
    %v801 = vpack.c.b16 %v786, %v785
    %v802 = vpack.c.b16 %v788, %v787
    %v803 = vpack.c.b16 %v790, %v789
    %v804 = vpack.c.b16 %v792, %v791
    %v805 = vpack.c.b16 %v794, %v793
    %v806 = vpack.c.b16 %v796, %v795
    %v807 = vpack.c.b16 %v798, %v797
    %v808 = vpack.c.b16 %v800, %v799
    %v811 = vunpack.c.l.b16 %v767
    %v812 = vunpack.c.l.b16 %v768
    %v813 = vpack.c.b16 %v812, %v811
    %v816 = vsel %vm186, %v801, 0
    %v819 = vsel %vm186, %v802, 0
    %v822 = vsel %vm186, %v803, 0
    %v825 = vsel %vm186, %v804, 0
    %v828 = vsel %vm186, %v805, 0
    %v831 = vsel %vm186, %v806, 0
    %v834 = vsel %vm186, %v807, 0
    %v837 = vsel %vm186, %v808, 0
    %839 = vmatprep.subr.bf16.mxu0 0
    %840 = vmatpush1.bf16.msra.mxu0 0
    %841 = vmatprep.subr.bf16.mxu0 0
    %842 = vmatpush1.bf16.msra.mxu0 0
    %843 = vmatprep.subr.bf16.mxu0 0
    %844 = vmatpush1.bf16.msra.mxu0 0
    %845 = vmatprep.subr.bf16.mxu0 0
    %846 = vmatpush1.bf16.msra.mxu0 0
    %847 = vmatprep.subr.bf16.mxu0 0
    %848 = vmatpush1.bf16.msra.mxu0 0
    %849 = vmatprep.subr.bf16.mxu0 0
    %850 = vmatpush1.bf16.msra.mxu0 0
    %851 = vmatprep.subr.bf16.mxu0 0
    %852 = vmatpush1.bf16.msra.mxu0 0
    %853 = vmatprep.subr.bf16.mxu0 0
    %854 = vmatpush1.bf16.msra.mxu0 %v813
    %855 = vmatprep.subr.bf16.mxu0 0
    %856 = vmatpush2.bf16.msra.mxu0 0
    %857 = vmatprep.subr.bf16.mxu0 0
    %858 = vmatpush2.bf16.msra.mxu0 0
    %859 = vmatprep.subr.bf16.mxu0 0
    %860 = vmatpush2.bf16.msra.mxu0 0
    %861 = vmatprep.subr.bf16.mxu0 0
    %862 = vmatpush2.bf16.msra.mxu0 0
    %863 = vmatprep.subr.bf16.mxu0 0
    %864 = vmatpush2.bf16.msra.mxu0 0
    %865 = vmatprep.subr.bf16.mxu0 0
    %866 = vmatpush2.bf16.msra.mxu0 0
    %867 = vmatprep.subr.bf16.mxu0 0
    %868 = vmatpush2.bf16.msra.mxu0 0
    %869 = vmatprep.subr.bf16.mxu0 0
    %870 = vmatpush2.bf16.msra.mxu0 0
    %871 = vmatprep.mubr.bf16.mxu0 0
    %872 = vmatmul.mubr.bf16.gmra.mxu0 %v816
    %v873 = vpop.f32.mrf.mxu0
    %v874 = vadd.f32 0.0, %v873
    %v875 = vpop.f32.mrf.mxu0
    %v876 = vpop.f32.mrf.mxu0
    %v877 = vadd.f32 0.0, %v876
    %v878 = vpop.f32.mrf.mxu0
    %879 = vmatprep.mubr.bf16.mxu0 0
    %880 = vmatmul.mubr.bf16.gmra.mxu0 %v819
    %v881 = vpop.f32.mrf.mxu0
    %v882 = vadd.f32 0.0, %v881
    %v883 = vpop.f32.mrf.mxu0
    %v884 = vpop.f32.mrf.mxu0
    %v885 = vadd.f32 0.0, %v884
    %v886 = vpop.f32.mrf.mxu0
    %887 = vmatprep.mubr.bf16.mxu0 0
    %888 = vmatmul.mubr.bf16.gmra.mxu0 %v822
    %v889 = vpop.f32.mrf.mxu0
    %v890 = vadd.f32 0.0, %v889
    %v891 = vpop.f32.mrf.mxu0
    %v892 = vpop.f32.mrf.mxu0
    %v893 = vadd.f32 0.0, %v892
    %v894 = vpop.f32.mrf.mxu0
    %895 = vmatprep.mubr.bf16.mxu0 0
    %896 = vmatmul.mubr.bf16.gmra.mxu0 %v825
    %v897 = vpop.f32.mrf.mxu0
    %v898 = vadd.f32 0.0, %v897
    %v899 = vpop.f32.mrf.mxu0
    %v900 = vpop.f32.mrf.mxu0
    %v901 = vadd.f32 0.0, %v900
    %v902 = vpop.f32.mrf.mxu0
    %903 = vmatprep.mubr.bf16.mxu0 0
    %904 = vmatmul.mubr.bf16.gmra.mxu0 %v828
    %v905 = vpop.f32.mrf.mxu0
    %v906 = vadd.f32 0.0, %v905
    %v907 = vpop.f32.mrf.mxu0
    %v908 = vpop.f32.mrf.mxu0
    %v909 = vadd.f32 0.0, %v908
    %v910 = vpop.f32.mrf.mxu0
    %911 = vmatprep.mubr.bf16.mxu0 0
    %912 = vmatmul.mubr.bf16.gmra.mxu0 %v831
    %v913 = vpop.f32.mrf.mxu0
    %v914 = vadd.f32 0.0, %v913
    %v915 = vpop.f32.mrf.mxu0
    %v916 = vpop.f32.mrf.mxu0
    %v917 = vadd.f32 0.0, %v916
    %v918 = vpop.f32.mrf.mxu0
    %919 = vmatprep.mubr.bf16.mxu0 0
    %920 = vmatmul.mubr.bf16.gmra.mxu0 %v834
    %v921 = vpop.f32.mrf.mxu0
    %v922 = vadd.f32 0.0, %v921
    %v923 = vpop.f32.mrf.mxu0
    %v924 = vpop.f32.mrf.mxu0
    %v925 = vadd.f32 0.0, %v924
    %v926 = vpop.f32.mrf.mxu0
    %927 = vmatprep.mubr.bf16.mxu0 0
    %928 = vmatmul.mubr.bf16.gmra.mxu0 %v837
    %v929 = vpop.f32.mrf.mxu0
    %v930 = vadd.f32 0.0, %v929
    %v931 = vpop.f32.mrf.mxu0
    %v932 = vpop.f32.mrf.mxu0
    %v933 = vadd.f32 0.0, %v932
    %v934 = vpop.f32.mrf.mxu0
    %935 = vdwg.mxu0
    %v936 = vadd.f32 %v689, %v874
    %v937 = vadd.f32 %v692, %v877
    %v938 = vadd.f32 %v697, %v882
    %v939 = vadd.f32 %v700, %v885
    %v940 = vadd.f32 %v705, %v890
    %v941 = vadd.f32 %v708, %v893
    %v942 = vadd.f32 %v713, %v898
    %v943 = vadd.f32 %v716, %v901
    %v944 = vadd.f32 %v721, %v906
    %v945 = vadd.f32 %v724, %v909
    %v946 = vadd.f32 %v729, %v914
    %v947 = vadd.f32 %v732, %v917
    %v948 = vadd.f32 %v737, %v922
    %v949 = vadd.f32 %v740, %v925
    %v950 = vadd.f32 %v745, %v930
    %v951 = vadd.f32 %v748, %v933
    %v952 = vld [vmem:[%s12] sm:$0x1]
    %v954 = vlaneseq
    %v955 = vshrl.u32 %v954, 7
    %v956 = vsub.s32 0, %v955
    %v957 = vrot.slane %v952, %v956
    %v959 = vadd.f32 %v936, %v957
    %v960 = vadd.f32 %v937, %v957
    %v961 = vadd.f32 %v938, %v957
    %v962 = vadd.f32 %v939, %v957
    %v963 = vadd.f32 %v940, %v957
    %v964 = vadd.f32 %v941, %v957
    %v965 = vadd.f32 %v942, %v957
    %v966 = vadd.f32 %v943, %v957
    %v967 = vadd.f32 %v944, %v957
    %v968 = vadd.f32 %v945, %v957
    %v969 = vadd.f32 %v946, %v957
    %v970 = vadd.f32 %v947, %v957
    %v971 = vadd.f32 %v948, %v957
    %v972 = vadd.f32 %v949, %v957
    %v973 = vadd.f32 %v950, %v957
    %v974 = vadd.f32 %v951, %v957
    %v975 = vld [vmem:[#allocation8] sm:$0x1]
    %v977 = vlaneseq
    %v978 = vshrl.u32 %v977, 7
    %v979 = vsub.s32 0, %v978
    %v980 = vrot.slane %v975, %v979
    %v982 = vmul.f32 %v959, %v980
    %v983 = vmul.f32 %v960, %v980
    %v984 = vmul.f32 %v961, %v980
    %v985 = vmul.f32 %v962, %v980
    %v986 = vmul.f32 %v963, %v980
    %v987 = vmul.f32 %v964, %v980
    %v988 = vmul.f32 %v965, %v980
    %v989 = vmul.f32 %v966, %v980
    %v990 = vmul.f32 %v967, %v980
    %v991 = vmul.f32 %v968, %v980
    %v992 = vmul.f32 %v969, %v980
    %v993 = vmul.f32 %v970, %v980
    %v994 = vmul.f32 %v971, %v980
    %v995 = vmul.f32 %v972, %v980
    %v996 = vmul.f32 %v973, %v980
    %v997 = vmul.f32 %v974, %v980
    %v998 = vpack.c.bf16 %v983, %v982
    %v999 = vpack.c.bf16 %v985, %v984
    %v1000 = vpack.c.bf16 %v987, %v986
    %v1001 = vpack.c.bf16 %v989, %v988
    %v1002 = vpack.c.bf16 %v991, %v990
    %v1003 = vpack.c.bf16 %v993, %v992
    %v1004 = vpack.c.bf16 %v995, %v994
    %v1005 = vpack.c.bf16 %v997, %v996
    %v1006 = vld [vmem:[%s14] sm:$0xf]
    %v1007 = vld [vmem:[%s14 + $0x4] sm:$0xf]
    %v1008 = vld [vmem:[%s14 + $0x8] sm:$0xf]
    %v1009 = vld [vmem:[%s14 + $0xc] sm:$0xf]
    %v1010 = vld [vmem:[%s14 + $0x10] sm:$0xf]
    %v1011 = vld [vmem:[%s14 + $0x14] sm:$0xf]
    %v1012 = vld [vmem:[%s14 + $0x18] sm:$0xf]
    %v1013 = vld [vmem:[%s14 + $0x1c] sm:$0xf]
    %v1014 = vld [vmem:[%s14 + $0x20] sm:$0xf]
    %v1015 = vld [vmem:[%s14 + $0x24] sm:$0xf]
    %v1016 = vld [vmem:[%s14 + $0x28] sm:$0xf]
    %v1017 = vld [vmem:[%s14 + $0x2c] sm:$0xf]
    %v1018 = vld [vmem:[%s14 + $0x30] sm:$0xf]
    %v1019 = vld [vmem:[%s14 + $0x34] sm:$0xf]
    %v1020 = vld [vmem:[%s14 + $0x38] sm:$0xf]
    %v1021 = vld [vmem:[%s14 + $0x3c] sm:$0xf]
    %v1022 = vld [vmem:[#allocation10] sm:$0x1]
    %v1024 = vlaneseq
    %v1025 = vshrl.u32 %v1024, 7
    %v1026 = vsub.s32 0, %v1025
    %v1027 = vrot.slane %v1022, %v1026
    %v1045 = vunpack.c.l.b16 %v1006
    %v1046 = vunpack.c.l.b16 %v1007
    %v1047 = vunpack.c.l.b16 %v1008
    %v1048 = vunpack.c.l.b16 %v1009
    %v1049 = vunpack.c.l.b16 %v1010
    %v1050 = vunpack.c.l.b16 %v1011
    %v1051 = vunpack.c.l.b16 %v1012
    %v1052 = vunpack.c.l.b16 %v1013
    %v1053 = vunpack.c.l.b16 %v1014
    %v1054 = vunpack.c.l.b16 %v1015
    %v1055 = vunpack.c.l.b16 %v1016
    %v1056 = vunpack.c.l.b16 %v1017
    %v1057 = vunpack.c.l.b16 %v1018
    %v1058 = vunpack.c.l.b16 %v1019
    %v1059 = vunpack.c.l.b16 %v1020
    %v1060 = vunpack.c.l.b16 %v1021
    %v1061 = vpack.c.b16 %v1046, %v1045
    %v1062 = vpack.c.b16 %v1048, %v1047
    %v1063 = vpack.c.b16 %v1050, %v1049
    %v1064 = vpack.c.b16 %v1052, %v1051
    %v1065 = vpack.c.b16 %v1054, %v1053
    %v1066 = vpack.c.b16 %v1056, %v1055
    %v1067 = vpack.c.b16 %v1058, %v1057
    %v1068 = vpack.c.b16 %v1060, %v1059
    %1077 = vmatprep.subr.bf16.mxu0 0
    %1078 = vmatpush1.bf16.msra.mxu0 %v1068
    %1079 = vmatprep.subr.bf16.mxu0 0
    %1080 = vmatpush1.bf16.msra.mxu0 %v1067
    %1081 = vmatprep.subr.bf16.mxu0 0
    %1082 = vmatpush1.bf16.msra.mxu0 %v1066
    %1083 = vmatprep.subr.bf16.mxu0 0
    %1084 = vmatpush1.bf16.msra.mxu0 %v1065
    %1085 = vmatprep.subr.bf16.mxu0 0
    %1086 = vmatpush1.bf16.msra.mxu0 %v1064
    %1087 = vmatprep.subr.bf16.mxu0 0
    %1088 = vmatpush1.bf16.msra.mxu0 %v1063
    %1089 = vmatprep.subr.bf16.mxu0 0
    %1090 = vmatpush1.bf16.msra.mxu0 %v1062
    %1091 = vmatprep.subr.bf16.mxu0 0
    %1092 = vmatpush1.bf16.msra.mxu0 %v1061
    %1093 = vmatprep.subr.bf16.mxu0 0
    %1094 = vmatpush2.bf16.msra.mxu0 0
    %1095 = vmatprep.subr.bf16.mxu0 0
    %1096 = vmatpush2.bf16.msra.mxu0 0
    %1097 = vmatprep.subr.bf16.mxu0 0
    %1098 = vmatpush2.bf16.msra.mxu0 0
    %1099 = vmatprep.subr.bf16.mxu0 0
    %1100 = vmatpush2.bf16.msra.mxu0 0
    %1101 = vmatprep.subr.bf16.mxu0 0
    %1102 = vmatpush2.bf16.msra.mxu0 0
    %1103 = vmatprep.subr.bf16.mxu0 0
    %1104 = vmatpush2.bf16.msra.mxu0 0
    %1105 = vmatprep.subr.bf16.mxu0 0
    %1106 = vmatpush2.bf16.msra.mxu0 0
    %1107 = vmatprep.subr.bf16.mxu0 0
    %1108 = vmatpush2.bf16.msra.mxu0 0
    %1109 = vmatprep.mubr.bf16.mxu0 0
    %1110 = vmatmul.mubr.bf16.gmra.mxu0 %v998
    %v1111 = vpop.f32.mrf.mxu0
    %v1112 = vadd.f32 %v1027, %v1111
    %v1113 = vpop.f32.mrf.mxu0
    %v1114 = vpop.f32.mrf.mxu0
    %v1115 = vadd.f32 %v1027, %v1114
    %v1116 = vpop.f32.mrf.mxu0
    %1117 = vmatprep.mubr.bf16.mxu0 0
    %1118 = vmatmul.mubr.bf16.gmra.mxu0 %v999
    %v1119 = vpop.f32.mrf.mxu0
    %v1120 = vadd.f32 %v1027, %v1119
    %v1121 = vpop.f32.mrf.mxu0
    %v1122 = vpop.f32.mrf.mxu0
    %v1123 = vadd.f32 %v1027, %v1122
    %v1124 = vpop.f32.mrf.mxu0
    %1125 = vmatprep.mubr.bf16.mxu0 0
    %1126 = vmatmul.mubr.bf16.gmra.mxu0 %v1000
    %v1127 = vpop.f32.mrf.mxu0
    %v1128 = vadd.f32 %v1027, %v1127
    %v1129 = vpop.f32.mrf.mxu0
    %v1130 = vpop.f32.mrf.mxu0
    %v1131 = vadd.f32 %v1027, %v1130
    %v1132 = vpop.f32.mrf.mxu0
    %1133 = vmatprep.mubr.bf16.mxu0 0
    %1134 = vmatmul.mubr.bf16.gmra.mxu0 %v1001
    %v1135 = vpop.f32.mrf.mxu0
    %v1136 = vadd.f32 %v1027, %v1135
    %v1137 = vpop.f32.mrf.mxu0
    %v1138 = vpop.f32.mrf.mxu0
    %v1139 = vadd.f32 %v1027, %v1138
    %v1140 = vpop.f32.mrf.mxu0
    %1141 = vmatprep.mubr.bf16.mxu0 0
    %1142 = vmatmul.mubr.bf16.gmra.mxu0 %v1002
    %v1143 = vpop.f32.mrf.mxu0
    %v1144 = vadd.f32 %v1027, %v1143
    %v1145 = vpop.f32.mrf.mxu0
    %v1146 = vpop.f32.mrf.mxu0
    %v1147 = vadd.f32 %v1027, %v1146
    %v1148 = vpop.f32.mrf.mxu0
    %1149 = vmatprep.mubr.bf16.mxu0 0
    %1150 = vmatmul.mubr.bf16.gmra.mxu0 %v1003
    %v1151 = vpop.f32.mrf.mxu0
    %v1152 = vadd.f32 %v1027, %v1151
    %v1153 = vpop.f32.mrf.mxu0
    %v1154 = vpop.f32.mrf.mxu0
    %v1155 = vadd.f32 %v1027, %v1154
    %v1156 = vpop.f32.mrf.mxu0
    %1157 = vmatprep.mubr.bf16.mxu0 0
    %1158 = vmatmul.mubr.bf16.gmra.mxu0 %v1004
    %v1159 = vpop.f32.mrf.mxu0
    %v1160 = vadd.f32 %v1027, %v1159
    %v1161 = vpop.f32.mrf.mxu0
    %v1162 = vpop.f32.mrf.mxu0
    %v1163 = vadd.f32 %v1027, %v1162
    %v1164 = vpop.f32.mrf.mxu0
    %1165 = vmatprep.mubr.bf16.mxu0 0
    %1166 = vmatmul.mubr.bf16.gmra.mxu0 %v1005
    %v1167 = vpop.f32.mrf.mxu0
    %v1168 = vadd.f32 %v1027, %v1167
    %v1169 = vpop.f32.mrf.mxu0
    %v1170 = vpop.f32.mrf.mxu0
    %v1171 = vadd.f32 %v1027, %v1170
    %v1172 = vpop.f32.mrf.mxu0
    %1173 = vdwg.mxu0
    %vm1174 = vcmp.ge.f32.partialorder %v1112, 0.0
    %vm1175 = vcmp.ge.f32.partialorder %v1115, 0.0
    %vm1176 = vcmp.ge.f32.partialorder %v1120, 0.0
    %vm1177 = vcmp.ge.f32.partialorder %v1123, 0.0
    %vm1178 = vcmp.ge.f32.partialorder %v1128, 0.0
    %vm1179 = vcmp.ge.f32.partialorder %v1131, 0.0
    %vm1180 = vcmp.ge.f32.partialorder %v1136, 0.0
    %vm1181 = vcmp.ge.f32.partialorder %v1139, 0.0
    %vm1182 = vcmp.ge.f32.partialorder %v1144, 0.0
    %vm1183 = vcmp.ge.f32.partialorder %v1147, 0.0
    %vm1184 = vcmp.ge.f32.partialorder %v1152, 0.0
    %vm1185 = vcmp.ge.f32.partialorder %v1155, 0.0
    %vm1186 = vcmp.ge.f32.partialorder %v1160, 0.0
    %vm1187 = vcmp.ge.f32.partialorder %v1163, 0.0
    %vm1188 = vcmp.ge.f32.partialorder %v1168, 0.0
    %vm1189 = vcmp.ge.f32.partialorder %v1171, 0.0
    %v1190 = vmul.f32 %v1112, 0.01
    %v1191 = vmul.f32 %v1115, 0.01
    %v1192 = vmul.f32 %v1120, 0.01
    %v1193 = vmul.f32 %v1123, 0.01
    %v1194 = vmul.f32 %v1128, 0.01
    %v1195 = vmul.f32 %v1131, 0.01
    %v1196 = vmul.f32 %v1136, 0.01
    %v1197 = vmul.f32 %v1139, 0.01
    %v1198 = vmul.f32 %v1144, 0.01
    %v1199 = vmul.f32 %v1147, 0.01
    %v1200 = vmul.f32 %v1152, 0.01
    %v1201 = vmul.f32 %v1155, 0.01
    %v1202 = vmul.f32 %v1160, 0.01
    %v1203 = vmul.f32 %v1163, 0.01
    %v1204 = vmul.f32 %v1168, 0.01
    %v1205 = vmul.f32 %v1171, 0.01
    %v1206 = vsel %vm1174, %v1112, %v1190
    %v1207 = vsel %vm1175, %v1115, %v1191
    %v1208 = vsel %vm1176, %v1120, %v1192
    %v1209 = vsel %vm1177, %v1123, %v1193
    %v1210 = vsel %vm1178, %v1128, %v1194
    %v1211 = vsel %vm1179, %v1131, %v1195
    %v1212 = vsel %vm1180, %v1136, %v1196
    %v1213 = vsel %vm1181, %v1139, %v1197
    %v1214 = vsel %vm1182, %v1144, %v1198
    %v1215 = vsel %vm1183, %v1147, %v1199
    %v1216 = vsel %vm1184, %v1152, %v1200
    %v1217 = vsel %vm1185, %v1155, %v1201
    %v1218 = vsel %vm1186, %v1160, %v1202
    %v1219 = vsel %vm1187, %v1163, %v1203
    %v1220 = vsel %vm1188, %v1168, %v1204
    %v1221 = vsel %vm1189, %v1171, %v1205
    %v1222 = vld [vmem:[%s8] sm:$0xff]
    %v1223 = vld [vmem:[%s8 + $0x8] sm:$0xff]
    %v1224 = vld [vmem:[%s8 + $0x10] sm:$0xff]
    %v1225 = vld [vmem:[%s8 + $0x18] sm:$0xff]
    %v1226 = vld [vmem:[%s8 + $0x20] sm:$0xff]
    %v1227 = vld [vmem:[%s8 + $0x28] sm:$0xff]
    %v1228 = vld [vmem:[%s8 + $0x30] sm:$0xff]
    %v1229 = vld [vmem:[%s8 + $0x38] sm:$0xff]
    %v1230 = vld [vmem:[%s8 + $0x40] sm:$0xff]
    %v1231 = vld [vmem:[%s8 + $0x48] sm:$0xff]
    %v1232 = vld [vmem:[%s8 + $0x50] sm:$0xff]
    %v1233 = vld [vmem:[%s8 + $0x58] sm:$0xff]
    %v1234 = vld [vmem:[%s8 + $0x60] sm:$0xff]
    %v1235 = vld [vmem:[%s8 + $0x68] sm:$0xff]
    %v1236 = vld [vmem:[%s8 + $0x70] sm:$0xff]
    %v1237 = vld [vmem:[%s8 + $0x78] sm:$0xff]
    %vm1238 = vcmp.gt.f32.partialorder %v1222, 0.0
    %vm1239 = vcmp.gt.f32.partialorder %v1223, 0.0
    %vm1240 = vcmp.gt.f32.partialorder %v1224, 0.0
    %vm1241 = vcmp.gt.f32.partialorder %v1225, 0.0
    %vm1242 = vcmp.gt.f32.partialorder %v1226, 0.0
    %vm1243 = vcmp.gt.f32.partialorder %v1227, 0.0
    %vm1244 = vcmp.gt.f32.partialorder %v1228, 0.0
    %vm1245 = vcmp.gt.f32.partialorder %v1229, 0.0
    %vm1246 = vcmp.gt.f32.partialorder %v1230, 0.0
    %vm1247 = vcmp.gt.f32.partialorder %v1231, 0.0
    %vm1248 = vcmp.gt.f32.partialorder %v1232, 0.0
    %vm1249 = vcmp.gt.f32.partialorder %v1233, 0.0
    %vm1250 = vcmp.gt.f32.partialorder %v1234, 0.0
    %vm1251 = vcmp.gt.f32.partialorder %v1235, 0.0
    %vm1252 = vcmp.gt.f32.partialorder %v1236, 0.0
    %vm1253 = vcmp.gt.f32.partialorder %v1237, 0.0
    %v1254 = vsel %vm1238, 1, 0
    %v1255 = vsel %vm1239, 1, 0
    %v1256 = vsel %vm1240, 1, 0
    %v1257 = vsel %vm1241, 1, 0
    %v1258 = vsel %vm1242, 1, 0
    %v1259 = vsel %vm1243, 1, 0
    %v1260 = vsel %vm1244, 1, 0
    %v1261 = vsel %vm1245, 1, 0
    %v1262 = vsel %vm1246, 1, 0
    %v1263 = vsel %vm1247, 1, 0
    %v1264 = vsel %vm1248, 1, 0
    %v1265 = vsel %vm1249, 1, 0
    %v1266 = vsel %vm1250, 1, 0
    %v1267 = vsel %vm1251, 1, 0
    %v1268 = vsel %vm1252, 1, 0
    %v1269 = vsel %vm1253, 1, 0
    %1270 = vset.pattern.permute.xlu0 0
    %1271 = vperm.xlu0 %1270, %v1254
    %v1272 = vpop.permute.xlu0 %1271
    %1273 = vset.pattern.permute.xlu0 0
    %1274 = vperm.xlu0 %1273, %v1255
    %v1275 = vpop.permute.xlu0 %1274
    %1276 = vset.pattern.permute.xlu0 0
    %1277 = vperm.xlu0 %1276, %v1256
    %v1278 = vpop.permute.xlu0 %1277
    %1279 = vset.pattern.permute.xlu0 0
    %1280 = vperm.xlu0 %1279, %v1257
    %v1281 = vpop.permute.xlu0 %1280
    %1282 = vset.pattern.permute.xlu0 0
    %1283 = vperm.xlu0 %1282, %v1258
    %v1284 = vpop.permute.xlu0 %1283
    %1285 = vset.pattern.permute.xlu0 0
    %1286 = vperm.xlu0 %1285, %v1259
    %v1287 = vpop.permute.xlu0 %1286
    %1288 = vset.pattern.permute.xlu0 0
    %1289 = vperm.xlu0 %1288, %v1260
    %v1290 = vpop.permute.xlu0 %1289
    %1291 = vset.pattern.permute.xlu0 0
    %1292 = vperm.xlu0 %1291, %v1261
    %v1293 = vpop.permute.xlu0 %1292
    %1294 = vset.pattern.permute.xlu0 0
    %1295 = vperm.xlu0 %1294, %v1262
    %v1296 = vpop.permute.xlu0 %1295
    %1297 = vset.pattern.permute.xlu0 0
    %1298 = vperm.xlu0 %1297, %v1263
    %v1299 = vpop.permute.xlu0 %1298
    %1300 = vset.pattern.permute.xlu0 0
    %1301 = vperm.xlu0 %1300, %v1264
    %v1302 = vpop.permute.xlu0 %1301
    %1303 = vset.pattern.permute.xlu0 0
    %1304 = vperm.xlu0 %1303, %v1265
    %v1305 = vpop.permute.xlu0 %1304
    %1306 = vset.pattern.permute.xlu0 0
    %1307 = vperm.xlu0 %1306, %v1266
    %v1308 = vpop.permute.xlu0 %1307
    %1309 = vset.pattern.permute.xlu0 0
    %1310 = vperm.xlu0 %1309, %v1267
    %v1311 = vpop.permute.xlu0 %1310
    %1312 = vset.pattern.permute.xlu0 0
    %1313 = vperm.xlu0 %1312, %v1268
    %v1314 = vpop.permute.xlu0 %1313
    %1315 = vset.pattern.permute.xlu0 0
    %1316 = vperm.xlu0 %1315, %v1269
    %v1317 = vpop.permute.xlu0 %1316
    %vm1318 = vcmp.eq.s32.totalorder %v1272, 1
    %vm1319 = vcmp.eq.s32.totalorder %v1275, 1
    %vm1320 = vcmp.eq.s32.totalorder %v1278, 1
    %vm1321 = vcmp.eq.s32.totalorder %v1281, 1
    %vm1322 = vcmp.eq.s32.totalorder %v1284, 1
    %vm1323 = vcmp.eq.s32.totalorder %v1287, 1
    %vm1324 = vcmp.eq.s32.totalorder %v1290, 1
    %vm1325 = vcmp.eq.s32.totalorder %v1293, 1
    %vm1326 = vcmp.eq.s32.totalorder %v1296, 1
    %vm1327 = vcmp.eq.s32.totalorder %v1299, 1
    %vm1328 = vcmp.eq.s32.totalorder %v1302, 1
    %vm1329 = vcmp.eq.s32.totalorder %v1305, 1
    %vm1330 = vcmp.eq.s32.totalorder %v1308, 1
    %vm1331 = vcmp.eq.s32.totalorder %v1311, 1
    %vm1332 = vcmp.eq.s32.totalorder %v1314, 1
    %vm1333 = vcmp.eq.s32.totalorder %v1317, 1
    %v1334 = vsel %vm1318, %v1206, -1e+30
    %v1335 = vsel %vm1319, %v1207, -1e+30
    %v1336 = vsel %vm1320, %v1208, -1e+30
    %v1337 = vsel %vm1321, %v1209, -1e+30
    %v1338 = vsel %vm1322, %v1210, -1e+30
    %v1339 = vsel %vm1323, %v1211, -1e+30
    %v1340 = vsel %vm1324, %v1212, -1e+30
    %v1341 = vsel %vm1325, %v1213, -1e+30
    %v1342 = vsel %vm1326, %v1214, -1e+30
    %v1343 = vsel %vm1327, %v1215, -1e+30
    %v1344 = vsel %vm1328, %v1216, -1e+30
    %v1345 = vsel %vm1329, %v1217, -1e+30
    %v1346 = vsel %vm1330, %v1218, -1e+30
    %v1347 = vsel %vm1331, %v1219, -1e+30
    %v1348 = vsel %vm1332, %v1220, -1e+30
    %v1349 = vsel %vm1333, %v1221, -1e+30
    %v1350 = vmax.f32 %v1334, %v1338
    %v1351 = vmax.f32 %v1335, %v1339
    %v1352 = vmax.f32 %v1336, %v1340
    %v1353 = vmax.f32 %v1337, %v1341
    %v1354 = vmax.f32 %v1350, %v1342
    %v1355 = vmax.f32 %v1351, %v1343
    %v1356 = vmax.f32 %v1352, %v1344
    %v1357 = vmax.f32 %v1353, %v1345
    %v1358 = vmax.f32 %v1354, %v1346
    %v1359 = vmax.f32 %v1355, %v1347
    %v1360 = vmax.f32 %v1356, %v1348
    %v1361 = vmax.f32 %v1357, %v1349
    %v1362 = vmax.f32 %v1358, %v1359
    %v1363 = vmax.f32 %v1360, %v1361
    %v1364 = vmax.f32 %v1362, %v1363
    %v1365 = vrot.slane %v1364, 4
    %v1366 = vmax.f32 %v1364, %v1365
    %v1367 = vrot.slane %v1366, 2
    %v1368 = vmax.f32 %v1366, %v1367
    %v1369 = vrot.slane %v1368, 1
    %v1370 = vmax.f32 %v1368, %v1369
    %v1371 = vsub.f32 %v1334, %v1370
    %v1372 = vsub.f32 %v1335, %v1370
    %v1373 = vsub.f32 %v1336, %v1370
    %v1374 = vsub.f32 %v1337, %v1370
    %v1375 = vsub.f32 %v1338, %v1370
    %v1376 = vsub.f32 %v1339, %v1370
    %v1377 = vsub.f32 %v1340, %v1370
    %v1378 = vsub.f32 %v1341, %v1370
    %v1379 = vsub.f32 %v1342, %v1370
    %v1380 = vsub.f32 %v1343, %v1370
    %v1381 = vsub.f32 %v1344, %v1370
    %v1382 = vsub.f32 %v1345, %v1370
    %v1383 = vsub.f32 %v1346, %v1370
    %v1384 = vsub.f32 %v1347, %v1370
    %v1385 = vsub.f32 %v1348, %v1370
    %v1386 = vsub.f32 %v1349, %v1370
    %v1387 = vmul.f32 %v1371, 1.442695
    %v1388 = vpow.pop %v1387
    %v1389 = vmul.f32 %v1372, 1.442695
    %v1390 = vpow.pop %v1389
    %v1391 = vmul.f32 %v1373, 1.442695
    %v1392 = vpow.pop %v1391
    %v1393 = vmul.f32 %v1374, 1.442695
    %v1394 = vpow.pop %v1393
    %v1395 = vmul.f32 %v1375, 1.442695
    %v1396 = vpow.pop %v1395
    %v1397 = vmul.f32 %v1376, 1.442695
    %v1398 = vpow.pop %v1397
    %v1399 = vmul.f32 %v1377, 1.442695
    %v1400 = vpow.pop %v1399
    %v1401 = vmul.f32 %v1378, 1.442695
    %v1402 = vpow.pop %v1401
    %v1403 = vmul.f32 %v1379, 1.442695
    %v1404 = vpow.pop %v1403
    %v1405 = vmul.f32 %v1380, 1.442695
    %v1406 = vpow.pop %v1405
    %v1407 = vmul.f32 %v1381, 1.442695
    %v1408 = vpow.pop %v1407
    %v1409 = vmul.f32 %v1382, 1.442695
    %v1410 = vpow.pop %v1409
    %v1411 = vmul.f32 %v1383, 1.442695
    %v1412 = vpow.pop %v1411
    %v1413 = vmul.f32 %v1384, 1.442695
    %v1414 = vpow.pop %v1413
    %v1415 = vmul.f32 %v1385, 1.442695
    %v1416 = vpow.pop %v1415
    %v1417 = vmul.f32 %v1386, 1.442695
    %v1418 = vpow.pop %v1417
    %1420 = vset.pattern.permute.xlu0 0
    %1421 = vperm.xlu0 %1420, %v1222
    %v1422 = vpop.permute.xlu0 %1421
    %1425 = vset.pattern.permute.xlu0 0
    %1426 = vperm.xlu0 %1425, %v1223
    %v1427 = vpop.permute.xlu0 %1426
    %1430 = vset.pattern.permute.xlu0 0
    %1431 = vperm.xlu0 %1430, %v1224
    %v1432 = vpop.permute.xlu0 %1431
    %1435 = vset.pattern.permute.xlu0 0
    %1436 = vperm.xlu0 %1435, %v1225
    %v1437 = vpop.permute.xlu0 %1436
    %1440 = vset.pattern.permute.xlu0 0
    %1441 = vperm.xlu0 %1440, %v1226
    %v1442 = vpop.permute.xlu0 %1441
    %1445 = vset.pattern.permute.xlu0 0
    %1446 = vperm.xlu0 %1445, %v1227
    %v1447 = vpop.permute.xlu0 %1446
    %1450 = vset.pattern.permute.xlu0 0
    %1451 = vperm.xlu0 %1450, %v1228
    %v1452 = vpop.permute.xlu0 %1451
    %1455 = vset.pattern.permute.xlu0 0
    %1456 = vperm.xlu0 %1455, %v1229
    %v1457 = vpop.permute.xlu0 %1456
    %1460 = vset.pattern.permute.xlu0 0
    %1461 = vperm.xlu0 %1460, %v1230
    %v1462 = vpop.permute.xlu0 %1461
    %1465 = vset.pattern.permute.xlu0 0
    %1466 = vperm.xlu0 %1465, %v1231
    %v1467 = vpop.permute.xlu0 %1466
    %1470 = vset.pattern.permute.xlu0 0
    %1471 = vperm.xlu0 %1470, %v1232
    %v1472 = vpop.permute.xlu0 %1471
    %1475 = vset.pattern.permute.xlu0 0
    %1476 = vperm.xlu0 %1475, %v1233
    %v1477 = vpop.permute.xlu0 %1476
    %1480 = vset.pattern.permute.xlu0 0
    %1481 = vperm.xlu0 %1480, %v1234
    %v1482 = vpop.permute.xlu0 %1481
    %1485 = vset.pattern.permute.xlu0 0
    %1486 = vperm.xlu0 %1485, %v1235
    %v1487 = vpop.permute.xlu0 %1486
    %1490 = vset.pattern.permute.xlu0 0
    %1491 = vperm.xlu0 %1490, %v1236
    %v1492 = vpop.permute.xlu0 %1491
    %1495 = vset.pattern.permute.xlu0 0
    %1496 = vperm.xlu0 %1495, %v1237
    %v1497 = vpop.permute.xlu0 %1496
    %v1499 = vmul.f32 %v1388, %v1422
    %v1500 = vmul.f32 %v1390, %v1427
    %v1501 = vmul.f32 %v1392, %v1432
    %v1502 = vmul.f32 %v1394, %v1437
    %v1503 = vmul.f32 %v1396, %v1442
    %v1504 = vmul.f32 %v1398, %v1447
    %v1505 = vmul.f32 %v1400, %v1452
    %v1506 = vmul.f32 %v1402, %v1457
    %v1507 = vmul.f32 %v1404, %v1462
    %v1508 = vmul.f32 %v1406, %v1467
    %v1509 = vmul.f32 %v1408, %v1472
    %v1510 = vmul.f32 %v1410, %v1477
    %v1511 = vmul.f32 %v1412, %v1482
    %v1512 = vmul.f32 %v1414, %v1487
    %v1513 = vmul.f32 %v1416, %v1492
    %v1514 = vmul.f32 %v1418, %v1497
    %v1515 = vld [vmem:[%s2] sm:$0xf]
    %v1516 = vld [vmem:[%s2 + $0x4] sm:$0xf]
    %v1517 = vld [vmem:[%s2 + $0x8] sm:$0xf]
    %v1518 = vld [vmem:[%s2 + $0xc] sm:$0xf]
    %v1519 = vld [vmem:[%s2 + $0x10] sm:$0xf]
    %v1520 = vld [vmem:[%s2 + $0x14] sm:$0xf]
    %v1521 = vld [vmem:[%s2 + $0x18] sm:$0xf]
    %v1522 = vld [vmem:[%s2 + $0x1c] sm:$0xf]
    %v1523 = vld [vmem:[%s2 + $0x20] sm:$0xf]
    %v1524 = vld [vmem:[%s2 + $0x24] sm:$0xf]
    %v1525 = vld [vmem:[%s2 + $0x28] sm:$0xf]
    %v1526 = vld [vmem:[%s2 + $0x2c] sm:$0xf]
    %v1527 = vld [vmem:[%s2 + $0x30] sm:$0xf]
    %v1528 = vld [vmem:[%s2 + $0x34] sm:$0xf]
    %v1529 = vld [vmem:[%s2 + $0x38] sm:$0xf]
    %v1530 = vld [vmem:[%s2 + $0x3c] sm:$0xf]
    %v1531 = vpack.c.bf16 %v1500, %v1499
    %v1532 = vpack.c.bf16 %v1502, %v1501
    %v1533 = vpack.c.bf16 %v1504, %v1503
    %v1534 = vpack.c.bf16 %v1506, %v1505
    %v1535 = vpack.c.bf16 %v1508, %v1507
    %v1536 = vpack.c.bf16 %v1510, %v1509
    %v1537 = vpack.c.bf16 %v1512, %v1511
    %v1538 = vpack.c.bf16 %v1514, %v1513
    %v1555 = vunpack.c.l.b16 %v1515
    %v1556 = vunpack.c.l.b16 %v1516
    %v1557 = vunpack.c.l.b16 %v1517
    %v1558 = vunpack.c.l.b16 %v1518
    %v1559 = vunpack.c.l.b16 %v1519
    %v1560 = vunpack.c.l.b16 %v1520
    %v1561 = vunpack.c.l.b16 %v1521
    %v1562 = vunpack.c.l.b16 %v1522
    %v1563 = vunpack.c.l.b16 %v1523
    %v1564 = vunpack.c.l.b16 %v1524
    %v1565 = vunpack.c.l.b16 %v1525
    %v1566 = vunpack.c.l.b16 %v1526
    %v1567 = vunpack.c.l.b16 %v1527
    %v1568 = vunpack.c.l.b16 %v1528
    %v1569 = vunpack.c.l.b16 %v1529
    %v1570 = vunpack.c.l.b16 %v1530
    %v1571 = vpack.c.b16 %v1556, %v1555
    %v1572 = vpack.c.b16 %v1558, %v1557
    %v1573 = vpack.c.b16 %v1560, %v1559
    %v1574 = vpack.c.b16 %v1562, %v1561
    %v1575 = vpack.c.b16 %v1564, %v1563
    %v1576 = vpack.c.b16 %v1566, %v1565
    %v1577 = vpack.c.b16 %v1568, %v1567
    %v1578 = vpack.c.b16 %v1570, %v1569
    %1587 = vmatprep.subr.bf16.mxu0 0
    %1588 = vmatpush1.bf16.msra.mxu0 %v1538
    %1589 = vmatprep.subr.bf16.mxu0 0
    %1590 = vmatpush1.bf16.msra.mxu0 %v1537
    %1591 = vmatprep.subr.bf16.mxu0 0
    %1592 = vmatpush1.bf16.msra.mxu0 %v1536
    %1593 = vmatprep.subr.bf16.mxu0 0
    %1594 = vmatpush1.bf16.msra.mxu0 %v1535
    %1595 = vmatprep.subr.bf16.mxu0 0
    %1596 = vmatpush1.bf16.msra.mxu0 %v1534
    %1597 = vmatprep.subr.bf16.mxu0 0
    %1598 = vmatpush1.bf16.msra.mxu0 %v1533
    %1599 = vmatprep.subr.bf16.mxu0 0
    %1600 = vmatpush1.bf16.msra.mxu0 %v1532
    %1601 = vmatprep.subr.bf16.mxu0 0
    %1602 = vmatpush1.bf16.msra.mxu0 %v1531
    %1603 = vmatprep.subr.bf16.mxu0 0
    %1604 = vmatpush2.bf16.msra.mxu0 0
    %1605 = vmatprep.subr.bf16.mxu0 0
    %1606 = vmatpush2.bf16.msra.mxu0 0
    %1607 = vmatprep.subr.bf16.mxu0 0
    %1608 = vmatpush2.bf16.msra.mxu0 0
    %1609 = vmatprep.subr.bf16.mxu0 0
    %1610 = vmatpush2.bf16.msra.mxu0 0
    %1611 = vmatprep.subr.bf16.mxu0 0
    %1612 = vmatpush2.bf16.msra.mxu0 0
    %1613 = vmatprep.subr.bf16.mxu0 0
    %1614 = vmatpush2.bf16.msra.mxu0 0
    %1615 = vmatprep.subr.bf16.mxu0 0
    %1616 = vmatpush2.bf16.msra.mxu0 0
    %1617 = vmatprep.subr.bf16.mxu0 0
    %1618 = vmatpush2.bf16.msra.mxu0 0
    %1619 = vmatprep.mubr.bf16.mxu0 0
    %1620 = vmatmul.mubr.bf16.gmra.mxu0 %v1571
    %v1621 = vpop.f32.mrf.mxu0
    %v1622 = vadd.f32 0.0, %v1621
    %v1623 = vpop.f32.mrf.mxu0
    %v1624 = vpop.f32.mrf.mxu0
    %v1625 = vadd.f32 0.0, %v1624
    %v1626 = vpop.f32.mrf.mxu0
    %1627 = vmatprep.mubr.bf16.mxu0 0
    %1628 = vmatmul.mubr.bf16.gmra.mxu0 %v1572
    %v1629 = vpop.f32.mrf.mxu0
    %v1630 = vadd.f32 0.0, %v1629
    %v1631 = vpop.f32.mrf.mxu0
    %v1632 = vpop.f32.mrf.mxu0
    %v1633 = vadd.f32 0.0, %v1632
    %v1634 = vpop.f32.mrf.mxu0
    %1635 = vmatprep.mubr.bf16.mxu0 0
    %1636 = vmatmul.mubr.bf16.gmra.mxu0 %v1573
    %v1637 = vpop.f32.mrf.mxu0
    %v1638 = vadd.f32 0.0, %v1637
    %v1639 = vpop.f32.mrf.mxu0
    %v1640 = vpop.f32.mrf.mxu0
    %v1641 = vadd.f32 0.0, %v1640
    %v1642 = vpop.f32.mrf.mxu0
    %1643 = vmatprep.mubr.bf16.mxu0 0
    %1644 = vmatmul.mubr.bf16.gmra.mxu0 %v1574
    %v1645 = vpop.f32.mrf.mxu0
    %v1646 = vadd.f32 0.0, %v1645
    %v1647 = vpop.f32.mrf.mxu0
    %v1648 = vpop.f32.mrf.mxu0
    %v1649 = vadd.f32 0.0, %v1648
    %v1650 = vpop.f32.mrf.mxu0
    %1651 = vmatprep.mubr.bf16.mxu0 0
    %1652 = vmatmul.mubr.bf16.gmra.mxu0 %v1575
    %v1653 = vpop.f32.mrf.mxu0
    %v1654 = vadd.f32 0.0, %v1653
    %v1655 = vpop.f32.mrf.mxu0
    %v1656 = vpop.f32.mrf.mxu0
    %v1657 = vadd.f32 0.0, %v1656
    %v1658 = vpop.f32.mrf.mxu0
    %1659 = vmatprep.mubr.bf16.mxu0 0
    %1660 = vmatmul.mubr.bf16.gmra.mxu0 %v1576
    %v1661 = vpop.f32.mrf.mxu0
    %v1662 = vadd.f32 0.0, %v1661
    %v1663 = vpop.f32.mrf.mxu0
    %v1664 = vpop.f32.mrf.mxu0
    %v1665 = vadd.f32 0.0, %v1664
    %v1666 = vpop.f32.mrf.mxu0
    %1667 = vmatprep.mubr.bf16.mxu0 0
    %1668 = vmatmul.mubr.bf16.gmra.mxu0 %v1577
    %v1669 = vpop.f32.mrf.mxu0
    %v1670 = vadd.f32 0.0, %v1669
    %v1671 = vpop.f32.mrf.mxu0
    %v1672 = vpop.f32.mrf.mxu0
    %v1673 = vadd.f32 0.0, %v1672
    %v1674 = vpop.f32.mrf.mxu0
    %1675 = vmatprep.mubr.bf16.mxu0 0
    %1676 = vmatmul.mubr.bf16.gmra.mxu0 %v1578
    %v1677 = vpop.f32.mrf.mxu0
    %v1678 = vadd.f32 0.0, %v1677
    %v1679 = vpop.f32.mrf.mxu0
    %v1680 = vpop.f32.mrf.mxu0
    %v1681 = vadd.f32 0.0, %v1680
    %v1682 = vpop.f32.mrf.mxu0
    %1683 = vdwg.mxu0
    %v1684 = vpack.c.bf16 %v1625, %v1622
    %v1685 = vpack.c.bf16 %v1633, %v1630
    %v1686 = vpack.c.bf16 %v1641, %v1638
    %v1687 = vpack.c.bf16 %v1649, %v1646
    %v1688 = vpack.c.bf16 %v1657, %v1654
    %v1689 = vpack.c.bf16 %v1665, %v1662
    %v1690 = vpack.c.bf16 %v1673, %v1670
    %v1691 = vpack.c.bf16 %v1681, %v1678
    %1692 = vmatprep.subr.bf16.mxu0 0
    %1693 = vmatpush1.bf16.msra.mxu0 %v1691
    %1694 = vmatprep.subr.bf16.mxu0 0
    %1695 = vmatpush1.bf16.msra.mxu0 %v1690
    %1696 = vmatprep.subr.bf16.mxu0 0
    %1697 = vmatpush1.bf16.msra.mxu0 %v1689
    %1698 = vmatprep.subr.bf16.mxu0 0
    %1699 = vmatpush1.bf16.msra.mxu0 %v1688
    %1700 = vmatprep.subr.bf16.mxu0 0
    %1701 = vmatpush1.bf16.msra.mxu0 %v1687
    %1702 = vmatprep.subr.bf16.mxu0 0
    %1703 = vmatpush1.bf16.msra.mxu0 %v1686
    %1704 = vmatprep.subr.bf16.mxu0 0
    %1705 = vmatpush1.bf16.msra.mxu0 %v1685
    %1706 = vmatprep.subr.bf16.mxu0 0
    %1707 = vmatpush1.bf16.msra.mxu0 %v1684
    %1708 = vmatprep.subr.bf16.mxu0 0
    %1709 = vmatpush2.bf16.msra.mxu0 0
    %1710 = vmatprep.subr.bf16.mxu0 0
    %1711 = vmatpush2.bf16.msra.mxu0 0
    %1712 = vmatprep.subr.bf16.mxu0 0
    %1713 = vmatpush2.bf16.msra.mxu0 0
    %1714 = vmatprep.subr.bf16.mxu0 0
    %1715 = vmatpush2.bf16.msra.mxu0 0
    %1716 = vmatprep.subr.bf16.mxu0 0
    %1717 = vmatpush2.bf16.msra.mxu0 0
    %1718 = vmatprep.subr.bf16.mxu0 0
    %1719 = vmatpush2.bf16.msra.mxu0 0
    %1720 = vmatprep.subr.bf16.mxu0 0
    %1721 = vmatpush2.bf16.msra.mxu0 0
    %1722 = vmatprep.subr.bf16.mxu0 0
    %1723 = vmatpush2.bf16.msra.mxu0 0
    %1724 = vmatprep.mubr.bf16.mxu0 0
    %1725 = vmatmul.mubr.bf16.gmra.mxu0 %v638
    %v1726 = vpop.f32.mrf.mxu0
    %v1727 = vadd.f32 0.0, %v1726
    %v1728 = vpop.f32.mrf.mxu0
    %v1729 = vpop.f32.mrf.mxu0
    %v1730 = vadd.f32 0.0, %v1729
    %v1731 = vpop.f32.mrf.mxu0
    %1732 = vmatprep.mubr.bf16.mxu0 0
    %1733 = vmatmul.mubr.bf16.gmra.mxu0 %v639
    %v1734 = vpop.f32.mrf.mxu0
    %v1735 = vadd.f32 0.0, %v1734
    %v1736 = vpop.f32.mrf.mxu0
    %v1737 = vpop.f32.mrf.mxu0
    %v1738 = vadd.f32 0.0, %v1737
    %v1739 = vpop.f32.mrf.mxu0
    %1740 = vmatprep.mubr.bf16.mxu0 0
    %1741 = vmatmul.mubr.bf16.gmra.mxu0 %v640
    %v1742 = vpop.f32.mrf.mxu0
    %v1743 = vadd.f32 0.0, %v1742
    %v1744 = vpop.f32.mrf.mxu0
    %v1745 = vpop.f32.mrf.mxu0
    %v1746 = vadd.f32 0.0, %v1745
    %v1747 = vpop.f32.mrf.mxu0
    %1748 = vmatprep.mubr.bf16.mxu0 0
    %1749 = vmatmul.mubr.bf16.gmra.mxu0 %v641
    %v1750 = vpop.f32.mrf.mxu0
    %v1751 = vadd.f32 0.0, %v1750
    %v1752 = vpop.f32.mrf.mxu0
    %v1753 = vpop.f32.mrf.mxu0
    %v1754 = vadd.f32 0.0, %v1753
    %v1755 = vpop.f32.mrf.mxu0
    %1756 = vmatprep.mubr.bf16.mxu0 0
    %1757 = vmatmul.mubr.bf16.gmra.mxu0 %v642
    %v1758 = vpop.f32.mrf.mxu0
    %v1759 = vadd.f32 0.0, %v1758
    %v1760 = vpop.f32.mrf.mxu0
    %v1761 = vpop.f32.mrf.mxu0
    %v1762 = vadd.f32 0.0, %v1761
    %v1763 = vpop.f32.mrf.mxu0
    %1764 = vmatprep.mubr.bf16.mxu0 0
    %1765 = vmatmul.mubr.bf16.gmra.mxu0 %v643
    %v1766 = vpop.f32.mrf.mxu0
    %v1767 = vadd.f32 0.0, %v1766
    %v1768 = vpop.f32.mrf.mxu0
    %v1769 = vpop.f32.mrf.mxu0
    %v1770 = vadd.f32 0.0, %v1769
    %v1771 = vpop.f32.mrf.mxu0
    %1772 = vmatprep.mubr.bf16.mxu0 0
    %1773 = vmatmul.mubr.bf16.gmra.mxu0 %v644
    %v1774 = vpop.f32.mrf.mxu0
    %v1775 = vadd.f32 0.0, %v1774
    %v1776 = vpop.f32.mrf.mxu0
    %v1777 = vpop.f32.mrf.mxu0
    %v1778 = vadd.f32 0.0, %v1777
    %v1779 = vpop.f32.mrf.mxu0
    %1780 = vmatprep.mubr.bf16.mxu0 0
    %1781 = vmatmul.mubr.bf16.gmra.mxu0 %v645
    %v1782 = vpop.f32.mrf.mxu0
    %v1783 = vadd.f32 0.0, %v1782
    %v1784 = vpop.f32.mrf.mxu0
    %v1785 = vpop.f32.mrf.mxu0
    %v1786 = vadd.f32 0.0, %v1785
    %v1787 = vpop.f32.mrf.mxu0
    %1788 = vdwg.mxu0
    %vm1789 = vcmp.gt.f32.partialorder %v1727, 0.0
    %vm1790 = vcmp.gt.f32.partialorder %v1730, 0.0
    %vm1791 = vcmp.gt.f32.partialorder %v1735, 0.0
    %vm1792 = vcmp.gt.f32.partialorder %v1738, 0.0
    %vm1793 = vcmp.gt.f32.partialorder %v1743, 0.0
    %vm1794 = vcmp.gt.f32.partialorder %v1746, 0.0
    %vm1795 = vcmp.gt.f32.partialorder %v1751, 0.0
    %vm1796 = vcmp.gt.f32.partialorder %v1754, 0.0
    %vm1797 = vcmp.gt.f32.partialorder %v1759, 0.0
    %vm1798 = vcmp.gt.f32.partialorder %v1762, 0.0
    %vm1799 = vcmp.gt.f32.partialorder %v1767, 0.0
    %vm1800 = vcmp.gt.f32.partialorder %v1770, 0.0
    %vm1801 = vcmp.gt.f32.partialorder %v1775, 0.0
    %vm1802 = vcmp.gt.f32.partialorder %v1778, 0.0
    %vm1803 = vcmp.gt.f32.partialorder %v1783, 0.0
    %vm1804 = vcmp.gt.f32.partialorder %v1786, 0.0
    %v1805 = vsel %vm1789, %v1727, 1.0
    %v1806 = vsel %vm1790, %v1730, 1.0
    %v1807 = vsel %vm1791, %v1735, 1.0
    %v1808 = vsel %vm1792, %v1738, 1.0
    %v1809 = vsel %vm1793, %v1743, 1.0
    %v1810 = vsel %vm1794, %v1746, 1.0
    %v1811 = vsel %vm1795, %v1751, 1.0
    %v1812 = vsel %vm1796, %v1754, 1.0
    %v1813 = vsel %vm1797, %v1759, 1.0
    %v1814 = vsel %vm1798, %v1762, 1.0
    %v1815 = vsel %vm1799, %v1767, 1.0
    %v1816 = vsel %vm1800, %v1770, 1.0
    %v1817 = vsel %vm1801, %v1775, 1.0
    %v1818 = vsel %vm1802, %v1778, 1.0
    %v1819 = vsel %vm1803, %v1783, 1.0
    %v1820 = vsel %vm1804, %v1786, 1.0
    %v1821 = vrcp.pop %v1805
    %v1822 = vrcp.pop %v1806
    %v1823 = vrcp.pop %v1807
    %v1824 = vrcp.pop %v1808
    %v1825 = vrcp.pop %v1809
    %v1826 = vrcp.pop %v1810
    %v1827 = vrcp.pop %v1811
    %v1828 = vrcp.pop %v1812
    %v1829 = vrcp.pop %v1813
    %v1830 = vrcp.pop %v1814
    %v1831 = vrcp.pop %v1815
    %v1832 = vrcp.pop %v1816
    %v1833 = vrcp.pop %v1817
    %v1834 = vrcp.pop %v1818
    %v1835 = vrcp.pop %v1819
    %v1836 = vrcp.pop %v1820
    %v1837 = vmul.f32 %v1499, %v1821
    %v1838 = vmul.f32 %v1500, %v1822
    %v1839 = vmul.f32 %v1501, %v1823
    %v1840 = vmul.f32 %v1502, %v1824
    %v1841 = vmul.f32 %v1503, %v1825
    %v1842 = vmul.f32 %v1504, %v1826
    %v1843 = vmul.f32 %v1505, %v1827
    %v1844 = vmul.f32 %v1506, %v1828
    %v1845 = vmul.f32 %v1507, %v1829
    %v1846 = vmul.f32 %v1508, %v1830
    %v1847 = vmul.f32 %v1509, %v1831
    %v1848 = vmul.f32 %v1510, %v1832
    %v1849 = vmul.f32 %v1511, %v1833
    %v1850 = vmul.f32 %v1512, %v1834
    %v1851 = vmul.f32 %v1513, %v1835
    %v1852 = vmul.f32 %v1514, %v1836
    %v1853 = vmul.f32 %v1837, %v959
    %v1854 = vmul.f32 %v1838, %v960
    %v1855 = vmul.f32 %v1839, %v961
    %v1856 = vmul.f32 %v1840, %v962
    %v1857 = vmul.f32 %v1841, %v963
    %v1858 = vmul.f32 %v1842, %v964
    %v1859 = vmul.f32 %v1843, %v965
    %v1860 = vmul.f32 %v1844, %v966
    %v1861 = vmul.f32 %v1845, %v967
    %v1862 = vmul.f32 %v1846, %v968
    %v1863 = vmul.f32 %v1847, %v969
    %v1864 = vmul.f32 %v1848, %v970
    %v1865 = vmul.f32 %v1849, %v971
    %v1866 = vmul.f32 %v1850, %v972
    %v1867 = vmul.f32 %v1851, %v973
    %v1868 = vmul.f32 %v1852, %v974
    %v1869 = vpack.c.bf16 %v1854, %v1853
    %v1870 = vpack.c.bf16 %v1856, %v1855
    %v1871 = vpack.c.bf16 %v1858, %v1857
    %v1872 = vpack.c.bf16 %v1860, %v1859
    %v1873 = vpack.c.bf16 %v1862, %v1861
    %v1874 = vpack.c.bf16 %v1864, %v1863
    %v1875 = vpack.c.bf16 %v1866, %v1865
    %v1876 = vpack.c.bf16 %v1868, %v1867
    %1877 = vmatprep.subr.bf16.mxu0 0
    %1878 = vmatpush1.bf16.msra.mxu0 %v1876
    %1879 = vmatprep.subr.bf16.mxu0 0
    %1880 = vmatpush1.bf16.msra.mxu0 %v1875
    %1881 = vmatprep.subr.bf16.mxu0 0
    %1882 = vmatpush1.bf16.msra.mxu0 %v1874
    %1883 = vmatprep.subr.bf16.mxu0 0
    %1884 = vmatpush1.bf16.msra.mxu0 %v1873
    %1885 = vmatprep.subr.bf16.mxu0 0
    %1886 = vmatpush1.bf16.msra.mxu0 %v1872
    %1887 = vmatprep.subr.bf16.mxu0 0
    %1888 = vmatpush1.bf16.msra.mxu0 %v1871
    %1889 = vmatprep.subr.bf16.mxu0 0
    %1890 = vmatpush1.bf16.msra.mxu0 %v1870
    %1891 = vmatprep.subr.bf16.mxu0 0
    %1892 = vmatpush1.bf16.msra.mxu0 %v1869
    %1893 = vmatprep.subr.bf16.mxu0 0
    %1894 = vmatpush2.bf16.msra.mxu0 0
    %1895 = vmatprep.subr.bf16.mxu0 0
    %1896 = vmatpush2.bf16.msra.mxu0 0
    %1897 = vmatprep.subr.bf16.mxu0 0
    %1898 = vmatpush2.bf16.msra.mxu0 0
    %1899 = vmatprep.subr.bf16.mxu0 0
    %1900 = vmatpush2.bf16.msra.mxu0 0
    %1901 = vmatprep.subr.bf16.mxu0 0
    %1902 = vmatpush2.bf16.msra.mxu0 0
    %1903 = vmatprep.subr.bf16.mxu0 0
    %1904 = vmatpush2.bf16.msra.mxu0 0
    %1905 = vmatprep.subr.bf16.mxu0 0
    %1906 = vmatpush2.bf16.msra.mxu0 0
    %1907 = vmatprep.subr.bf16.mxu0 0
    %1908 = vmatpush2.bf16.msra.mxu0 0
    %1909 = vmatprep.mubr.bf16.mxu0 0
    %1910 = vmatmul.mubr.bf16.gmra.mxu0 %v1571
    %v1911 = vpop.f32.mrf.mxu0
    %v1912 = vadd.f32 0.0, %v1911
    %v1913 = vpop.f32.mrf.mxu0
    %v1914 = vpop.f32.mrf.mxu0
    %v1915 = vadd.f32 0.0, %v1914
    %v1916 = vpop.f32.mrf.mxu0
    %1917 = vmatprep.mubr.bf16.mxu0 0
    %1918 = vmatmul.mubr.bf16.gmra.mxu0 %v1572
    %v1919 = vpop.f32.mrf.mxu0
    %v1920 = vadd.f32 0.0, %v1919
    %v1921 = vpop.f32.mrf.mxu0
    %v1922 = vpop.f32.mrf.mxu0
    %v1923 = vadd.f32 0.0, %v1922
    %v1924 = vpop.f32.mrf.mxu0
    %1925 = vmatprep.mubr.bf16.mxu0 0
    %1926 = vmatmul.mubr.bf16.gmra.mxu0 %v1573
    %v1927 = vpop.f32.mrf.mxu0
    %v1928 = vadd.f32 0.0, %v1927
    %v1929 = vpop.f32.mrf.mxu0
    %v1930 = vpop.f32.mrf.mxu0
    %v1931 = vadd.f32 0.0, %v1930
    %v1932 = vpop.f32.mrf.mxu0
    %1933 = vmatprep.mubr.bf16.mxu0 0
    %1934 = vmatmul.mubr.bf16.gmra.mxu0 %v1574
    %v1935 = vpop.f32.mrf.mxu0
    %v1936 = vadd.f32 0.0, %v1935
    %v1937 = vpop.f32.mrf.mxu0
    %v1938 = vpop.f32.mrf.mxu0
    %v1939 = vadd.f32 0.0, %v1938
    %v1940 = vpop.f32.mrf.mxu0
    %1941 = vmatprep.mubr.bf16.mxu0 0
    %1942 = vmatmul.mubr.bf16.gmra.mxu0 %v1575
    %v1943 = vpop.f32.mrf.mxu0
    %v1944 = vadd.f32 0.0, %v1943
    %v1945 = vpop.f32.mrf.mxu0
    %v1946 = vpop.f32.mrf.mxu0
    %v1947 = vadd.f32 0.0, %v1946
    %v1948 = vpop.f32.mrf.mxu0
    %1949 = vmatprep.mubr.bf16.mxu0 0
    %1950 = vmatmul.mubr.bf16.gmra.mxu0 %v1576
    %v1951 = vpop.f32.mrf.mxu0
    %v1952 = vadd.f32 0.0, %v1951
    %v1953 = vpop.f32.mrf.mxu0
    %v1954 = vpop.f32.mrf.mxu0
    %v1955 = vadd.f32 0.0, %v1954
    %v1956 = vpop.f32.mrf.mxu0
    %1957 = vmatprep.mubr.bf16.mxu0 0
    %1958 = vmatmul.mubr.bf16.gmra.mxu0 %v1577
    %v1959 = vpop.f32.mrf.mxu0
    %v1960 = vadd.f32 0.0, %v1959
    %v1961 = vpop.f32.mrf.mxu0
    %v1962 = vpop.f32.mrf.mxu0
    %v1963 = vadd.f32 0.0, %v1962
    %v1964 = vpop.f32.mrf.mxu0
    %1965 = vmatprep.mubr.bf16.mxu0 0
    %1966 = vmatmul.mubr.bf16.gmra.mxu0 %v1578
    %v1967 = vpop.f32.mrf.mxu0
    %v1968 = vadd.f32 0.0, %v1967
    %v1969 = vpop.f32.mrf.mxu0
    %v1970 = vpop.f32.mrf.mxu0
    %v1971 = vadd.f32 0.0, %v1970
    %v1972 = vpop.f32.mrf.mxu0
    %1973 = vdwg.mxu0
    %1974 = vst [vmem:[#allocation11] sm:$0xff] %v1912
    %1975 = vst [vmem:[#allocation11 + $0x8] sm:$0xff] %v1915
    %1976 = vst [vmem:[#allocation11 + $0x10] sm:$0xff] %v1920
    %1977 = vst [vmem:[#allocation11 + $0x18] sm:$0xff] %v1923
    %1978 = vst [vmem:[#allocation11 + $0x20] sm:$0xff] %v1928
    %1979 = vst [vmem:[#allocation11 + $0x28] sm:$0xff] %v1931
    %1980 = vst [vmem:[#allocation11 + $0x30] sm:$0xff] %v1936
    %1981 = vst [vmem:[#allocation11 + $0x38] sm:$0xff] %v1939
    %1982 = vst [vmem:[#allocation11 + $0x40] sm:$0xff] %v1944
    %1983 = vst [vmem:[#allocation11 + $0x48] sm:$0xff] %v1947
    %1984 = vst [vmem:[#allocation11 + $0x50] sm:$0xff] %v1952
    %1985 = vst [vmem:[#allocation11 + $0x58] sm:$0xff] %v1955
    %1986 = vst [vmem:[#allocation11 + $0x60] sm:$0xff] %v1960
    %1987 = vst [vmem:[#allocation11 + $0x68] sm:$0xff] %v1963
    %1988 = vst [vmem:[#allocation11 + $0x70] sm:$0xff] %v1968
    %1989 = vst [vmem:[#allocation11 + $0x78] sm:$0xff] %v1971
    %v1990 = vpack.c.bf16 %v1915, %v1912
    %v1991 = vpack.c.bf16 %v1923, %v1920
    %v1992 = vpack.c.bf16 %v1931, %v1928
    %v1993 = vpack.c.bf16 %v1939, %v1936
    %v1994 = vpack.c.bf16 %v1947, %v1944
    %v1995 = vpack.c.bf16 %v1955, %v1952
    %v1996 = vpack.c.bf16 %v1963, %v1960
    %v1997 = vpack.c.bf16 %v1971, %v1968
    %v1998 = vld [vmem:[#allocation2] sm:$0xf]
    %1999 = vmatprep.subr.bf16.mxu0 0
    %2000 = vmatpush1.bf16.msra.mxu0 %v1997
    %2001 = vmatprep.subr.bf16.mxu0 0
    %2002 = vmatpush1.bf16.msra.mxu0 %v1996
    %2003 = vmatprep.subr.bf16.mxu0 0
    %2004 = vmatpush1.bf16.msra.mxu0 %v1995
    %2005 = vmatprep.subr.bf16.mxu0 0
    %2006 = vmatpush1.bf16.msra.mxu0 %v1994
    %2007 = vmatprep.subr.bf16.mxu0 0
    %2008 = vmatpush1.bf16.msra.mxu0 %v1993
    %2009 = vmatprep.subr.bf16.mxu0 0
    %2010 = vmatpush1.bf16.msra.mxu0 %v1992
    %2011 = vmatprep.subr.bf16.mxu0 0
    %2012 = vmatpush1.bf16.msra.mxu0 %v1991
    %2013 = vmatprep.subr.bf16.mxu0 0
    %2014 = vmatpush1.bf16.msra.mxu0 %v1990
    %2015 = vmatprep.subr.bf16.mxu0 0
    %2016 = vmatpush2.bf16.msra.mxu0 0
    %2017 = vmatprep.subr.bf16.mxu0 0
    %2018 = vmatpush2.bf16.msra.mxu0 0
    %2019 = vmatprep.subr.bf16.mxu0 0
    %2020 = vmatpush2.bf16.msra.mxu0 0
    %2021 = vmatprep.subr.bf16.mxu0 0
    %2022 = vmatpush2.bf16.msra.mxu0 0
    %2023 = vmatprep.subr.bf16.mxu0 0
    %2024 = vmatpush2.bf16.msra.mxu0 0
    %2025 = vmatprep.subr.bf16.mxu0 0
    %2026 = vmatpush2.bf16.msra.mxu0 0
    %2027 = vmatprep.subr.bf16.mxu0 0
    %2028 = vmatpush2.bf16.msra.mxu0 0
    %2029 = vmatprep.subr.bf16.mxu0 0
    %2030 = vmatpush2.bf16.msra.mxu0 0
    %2031 = vmatprep.mubr.bf16.mxu0 0
    %2032 = vmatmul.mubr.bf16.gmra.mxu0 %v1998
    %v2033 = vpop.f32.mrf.mxu0
    %v2034 = vadd.f32 0.0, %v2033
    %v2035 = vpop.f32.mrf.mxu0
    %v2036 = vpop.f32.mrf.mxu0
    %v2037 = vpop.f32.mrf.mxu0
    %2038 = vdwg.mxu0
    %2039 = vst [vmem:[#allocation12] sm:$0xff] %v2034
    %v2040 = vld [vmem:[#allocation5] sm:$0xf]
    %2041 = vmatprep.subr.bf16.mxu0 0
    %2042 = vmatpush1.bf16.msra.mxu0 %v1997
    %2043 = vmatprep.subr.bf16.mxu0 0
    %2044 = vmatpush1.bf16.msra.mxu0 %v1996
    %2045 = vmatprep.subr.bf16.mxu0 0
    %2046 = vmatpush1.bf16.msra.mxu0 %v1995
    %2047 = vmatprep.subr.bf16.mxu0 0
    %2048 = vmatpush1.bf16.msra.mxu0 %v1994
    %2049 = vmatprep.subr.bf16.mxu0 0
    %2050 = vmatpush1.bf16.msra.mxu0 %v1993
    %2051 = vmatprep.subr.bf16.mxu0 0
    %2052 = vmatpush1.bf16.msra.mxu0 %v1992
    %2053 = vmatprep.subr.bf16.mxu0 0
    %2054 = vmatpush1.bf16.msra.mxu0 %v1991
    %2055 = vmatprep.subr.bf16.mxu0 0
    %2056 = vmatpush1.bf16.msra.mxu0 %v1990
    %2057 = vmatprep.subr.bf16.mxu0 0
    %2058 = vmatpush2.bf16.msra.mxu0 0
    %2059 = vmatprep.subr.bf16.mxu0 0
    %2060 = vmatpush2.bf16.msra.mxu0 0
    %2061 = vmatprep.subr.bf16.mxu0 0
    %2062 = vmatpush2.bf16.msra.mxu0 0
    %2063 = vmatprep.subr.bf16.mxu0 0
    %2064 = vmatpush2.bf16.msra.mxu0 0
    %2065 = vmatprep.subr.bf16.mxu0 0
    %2066 = vmatpush2.bf16.msra.mxu0 0
    %2067 = vmatprep.subr.bf16.mxu0 0
    %2068 = vmatpush2.bf16.msra.mxu0 0
    %2069 = vmatprep.subr.bf16.mxu0 0
    %2070 = vmatpush2.bf16.msra.mxu0 0
    %2071 = vmatprep.subr.bf16.mxu0 0
    %2072 = vmatpush2.bf16.msra.mxu0 0
    %2073 = vmatprep.mubr.bf16.mxu0 0
    %2074 = vmatmul.mubr.bf16.gmra.mxu0 %v2040
    %v2075 = vpop.f32.mrf.mxu0
    %v2076 = vadd.f32 0.0, %v2075
    %v2077 = vpop.f32.mrf.mxu0
    %v2078 = vpop.f32.mrf.mxu0
    %v2079 = vpop.f32.mrf.mxu0
    %2080 = vdwg.mxu0
    %2081 = vst [vmem:[#allocation12 + $0x8] sm:$0xff] %v2076
    %v2082 = vld [vmem:[#allocation7] sm:$0xf]
    %v2083 = vld [vmem:[%s16] sm:$0xf]
    %v2084 = vld [vmem:[%s16 + $0x4] sm:$0xf]
    %v2085 = vld [vmem:[%s17] sm:$0x1]
    %v2087 = vlaneseq
    %v2088 = vshrl.u32 %v2087, 7
    %v2089 = vsub.s32 0, %v2088
    %v2090 = vrot.slane %v2085, %v2089
    %v2094 = vunpack.c.l.b16 %v2083
    %v2095 = vunpack.c.l.b16 %v2084
    %v2096 = vpack.c.b16 %v2095, %v2094
    %v2099 = vsel %vm186, %v2082, 0
    %2101 = vmatprep.subr.bf16.mxu0 0
    %2102 = vmatpush1.bf16.msra.mxu0 0
    %2103 = vmatprep.subr.bf16.mxu0 0
    %2104 = vmatpush1.bf16.msra.mxu0 0
    %2105 = vmatprep.subr.bf16.mxu0 0
    %2106 = vmatpush1.bf16.msra.mxu0 0
    %2107 = vmatprep.subr.bf16.mxu0 0
    %2108 = vmatpush1.bf16.msra.mxu0 0
    %2109 = vmatprep.subr.bf16.mxu0 0
    %2110 = vmatpush1.bf16.msra.mxu0 0
    %2111 = vmatprep.subr.bf16.mxu0 0
    %2112 = vmatpush1.bf16.msra.mxu0 0
    %2113 = vmatprep.subr.bf16.mxu0 0
    %2114 = vmatpush1.bf16.msra.mxu0 0
    %2115 = vmatprep.subr.bf16.mxu0 0
    %2116 = vmatpush1.bf16.msra.mxu0 %v2096
    %2117 = vmatprep.subr.bf16.mxu0 0
    %2118 = vmatpush2.bf16.msra.mxu0 0
    %2119 = vmatprep.subr.bf16.mxu0 0
    %2120 = vmatpush2.bf16.msra.mxu0 0
    %2121 = vmatprep.subr.bf16.mxu0 0
    %2122 = vmatpush2.bf16.msra.mxu0 0
    %2123 = vmatprep.subr.bf16.mxu0 0
    %2124 = vmatpush2.bf16.msra.mxu0 0
    %2125 = vmatprep.subr.bf16.mxu0 0
    %2126 = vmatpush2.bf16.msra.mxu0 0
    %2127 = vmatprep.subr.bf16.mxu0 0
    %2128 = vmatpush2.bf16.msra.mxu0 0
    %2129 = vmatprep.subr.bf16.mxu0 0
    %2130 = vmatpush2.bf16.msra.mxu0 0
    %2131 = vmatprep.subr.bf16.mxu0 0
    %2132 = vmatpush2.bf16.msra.mxu0 0
    %2133 = vmatprep.mubr.bf16.mxu0 0
    %2134 = vmatmul.mubr.bf16.gmra.mxu0 %v2099
    %v2135 = vpop.f32.mrf.mxu0
    %v2136 = vadd.f32 %v2090, %v2135
    %v2137 = vpop.f32.mrf.mxu0
    %v2138 = vpop.f32.mrf.mxu0
    %v2139 = vpop.f32.mrf.mxu0
    %2140 = vdwg.mxu0
    %2141 = vst [vmem:[#allocation12 + $0x10] sm:$0xff] %v2136
    // Predicated region
    $region94: #{tpu_custom_call.1} parent=1 // pred_check
      _
    $region95: #{tpu_custom_call.1} parent=1 // pred_check_branch
      %2143 = sbr.rel (0) target = $region97
    $region96: #{tpu_custom_call.1} parent=1 // pred_region
      %s2145 = ssub.s32 2048, 2048
      %2146 = vsyncadd [#allocation4], %s2145
      %s2147 = sshll.u32 [#allocation11], 4
      %s2148 = int_to_ptr.vmem [resolvable:$true] %s2147
      %2153 = dma.vmem_to_hbm [thread:$0]  %s2148, 2048, %s18, [#allocation4], 128, 128, 8
    $region97: #{tpu_custom_call.1} parent=1 // pred_fallthru
      _
    // Predicated region
    $region98: #{tpu_custom_call.1} parent=1 // pred_check
      _
    $region99: #{tpu_custom_call.1} parent=1 // pred_check_branch
      %2155 = sbr.rel (0) target = $region101
    $region100: #{tpu_custom_call.1} parent=1 // pred_region
      %s2157 = ssub.s32 384, 384
      %2158 = vsyncadd [#allocation13], %s2157
      %s2160 = sshll.u32 [#allocation12], 4
      %s2161 = int_to_ptr.vmem [resolvable:$true] %s2160
      %2163 = dma.vmem_to_hbm [thread:$0]  %s2161, 384, %s19, [#allocation13]
    $region101: #{tpu_custom_call.1} parent=1 // pred_fallthru
      _
    // Predicated region
    $region102: #{tpu_custom_call.1} parent=1 // pred_check
      _
    $region103: #{tpu_custom_call.1} parent=1 // pred_check_branch
      %2165 = sbr.rel (0) target = $region105
    $region104: #{tpu_custom_call.1} parent=1 // pred_region
      %2166 = dma.done [#allocation4], 2048
    $region105: #{tpu_custom_call.1} parent=1 // pred_fallthru
      _
    // Predicated region
    $region106: #{tpu_custom_call.1} parent=1 // pred_check
      _
    $region107: #{tpu_custom_call.1} parent=1 // pred_check_branch
      %2168 = sbr.rel (0) target = $region109
    $region108: #{tpu_custom_call.1} parent=1 // pred_region
      %2169 = dma.done [#allocation13], 384
    $region109: #{tpu_custom_call.1} parent=1 // pred_fallthru
      _
    %2170 = vsyncpa [#allocation3], 1
    %2171 = vsyncpa [#allocation6], 1
    %2172 = vsyncpa [#allocation9], 1
    %2173 = vsyncpa [#allocation4], 1
    %2174 = vsyncpa [#allocation13], 1

</llo_original>
